<compile_context>
chip_gen: v5e
topology: v5e:2x2
jax: 0.10.0
libtpu: 0.0.40
codegen_flags: <defaults>
</compile_context>

<pallas_src>
import math

import jax
import jax.numpy as jnp
from jax.experimental import pallas as pl
from jax.experimental.pallas import tpu as pltpu


def _round_up(x, m):
    return ((x + m - 1) // m) * m


def _choose_tile(ho, ws, target_m=512):
    """Pick TH (output rows per grid step) and the number of row tiles."""
    th = max(1, min(ho, target_m // max(1, ws)))
    if th >= ho:
        return ho, 1
    th = max(8, (th // 8) * 8)          # 8-aligned tiles when the map is split
    if th >= ho:
        return ho, 1
    return th, -(-ho // th)


def _make_bands(xs, th, nt):
    """xs: (B, R, Ws, C) with R >= nt*th + 3 -> (B, nt, (th+3)*Ws, C) halo bands."""
    B, _, Ws, C = xs.shape
    if nt == 1:
        bands = xs[:, None, :th + 3]
    else:
        bands = jnp.stack([xs[:, t * th:t * th + th + 3] for t in range(nt)], axis=1)
    return bands.reshape(B, nt, (th + 3) * Ws, C)


# ----------------------------------------------------------------------------
# Generic fused stride-1 conv kernel over a flattened halo band.
# Each branch is a list of taps (flattened_offset, weight_index); each tap does
# one (m_rows, Cin) x (Cin, Cout) matmul accumulated in a VMEM f32 scratch.
# Optional GDN / IGDN epilogue is applied on the accumulator before the store.
# ----------------------------------------------------------------------------
def _make_conv_kernel(branches, m_rows, gdn_mode):
    n_br = len(branches)
    has_gdn = gdn_mode is not None

    def kernel(*refs):
        band_ref = refs[0]          # (1, 1, (TH+3)*Ws, Cin)  bf16
        w_ref = refs[1]             # (T, Cin, Cout)          bf16 (resident)
        b_ref = refs[2]             # (1, Cout)               f32
        idx = 3
        if has_gdn:
            g_ref = refs[idx]       # (Cout, Cout) f32  (gamma^T)
            beta_ref = refs[idx + 1]
            idx += 2
        out_refs = refs[idx:idx + n_br]
        acc_ref = refs[idx + n_br]  # (m_rows, Cout) f32 VMEM scratch

        bias = b_ref[...]
        for br, taps in enumerate(branches):
            for ti, (off, k) in enumerate(taps):
                patch = band_ref[0, 0, off:off + m_rows, :]
                contrib = jnp.dot(patch, w_ref[k],
                                  preferred_element_type=jnp.float32)
                if ti == 0:
                    acc_ref[...] = contrib
                else:
                    acc_ref[...] += contrib
            y = acc_ref[...] + bias
            if has_gdn:
                z = jnp.dot(y * y, g_ref[...],
                            preferred_element_type=jnp.float32) + beta_ref[...]
                y = y * (jnp.sqrt(z) if gdn_mode == "igdn" else jax.lax.rsqrt(z))
            out_refs[br][0] = y.astype(out_refs[br].dtype)

    return kernel


def _conv_stride1_tiled(bands, wstack, bias, branches, th, ws, gdn, out_dtype):
    """bands: (B, nT, (th+3)*ws, Cin) bf16.  Returns n_branch arrays
    (B, nT*th*ws, Cout) in `out_dtype` (flattened rows x cols, incl. 2 garbage cols)."""
    B, nt, band_len, cin = bands.shape
    T, _, cout = wstack.shape
    m_rows = th * ws
    n_br = len(branches)

    in_specs = [pl.BlockSpec((1, 1, band_len, cin), lambda b, t: (b, t, 0, 0)),
                pl.BlockSpec((T, cin, cout), lambda b, t: (0, 0, 0)),
                pl.BlockSpec((1, cout), lambda b, t: (0, 0))]
    inputs = [bands, wstack, bias.reshape(1, cout).astype(jnp.float32)]

    gdn_mode = None
    if gdn is not None:
        gamma, beta, inverse = gdn
        gdn_mode = "igdn" if inverse else "gdn"
        in_specs += [pl.BlockSpec((cout, cout), lambda b, t: (0, 0)),
                     pl.BlockSpec((1, cout), lambda b, t: (0, 0))]
        inputs += [gamma.T.astype(jnp.float32),
                   beta.reshape(1, cout).astype(jnp.float32)]

    out_spec = pl.BlockSpec((1, m_rows, cout), lambda b, t: (b, t, 0))
    out_shape = jax.ShapeDtypeStruct((B, nt * m_rows, cout), out_dtype)

    outs = pl.pallas_call(
        _make_conv_kernel(branches, m_rows, gdn_mode),
        grid=(B, nt),
        in_specs=in_specs,
        out_specs=tuple([out_spec] * n_br) if n_br > 1 else out_spec,
        out_shape=tuple([out_shape] * n_br) if n_br > 1 else out_shape,
        scratch_shapes=[pltpu.VMEM((m_rows, cout), jnp.float32)],
        compiler_params=pltpu.CompilerParams(
            dimension_semantics=("parallel", "parallel")),
    )(*inputs)
    return list(outs) if n_br > 1 else [outs]


# ----------------------------------------------------------------------------
# Conv 5x5 / stride 2 / pad 2   (space-to-depth -> stride-1 3x3 over 4*Cin)
# ----------------------------------------------------------------------------
def _conv5x5_s2(x, w, b, gdn=None, out_dtype=jnp.bfloat16):
    """x: (B, H, W, Ci) NHWC.  w: (Cout, Ci, 5, 5) PyTorch Conv2d layout."""
    B, H, W, Ci = x.shape
    Cout = w.shape[0]
    Ho, Wo = H // 2, W // 2
    Ws = Wo + 2
    th, nt = _choose_tile(Ho, Ws)
    Ho_pad = nt * th

    xb = x.astype(jnp.bfloat16)
    xp = jnp.pad(xb, ((0, 0), (2, 2 * Ho_pad + 4 - H), (2, 2 * Ws - W - 2), (0, 0)))
    xs = (xp.reshape(B, Ho_pad + 3, 2, Ws, 2, Ci)
            .transpose(0, 1, 3, 2, 4, 5)
            .reshape(B, Ho_pad + 3, Ws, 4 * Ci))
    bands = _make_bands(xs, th, nt)

    # Embed the 5x5 kernel in a 6x6 and regroup to 3x3 taps over 4*Ci channels
    # matching the space-to-depth channel order ((2*row_par + col_par)*Ci + ci).
    w5 = jnp.transpose(w, (2, 3, 1, 0))                              # (5,5,Ci,Cout)
    w6 = jnp.zeros((6, 6, Ci, Cout), w.dtype).at[:5, :5].set(w5)
    w3 = (w6.reshape(3, 2, 3, 2, Ci, Cout)
             .transpose(0, 2, 1, 3, 4, 5)
             .reshape(9, 4 * Ci, Cout))
    wstack = w3.astype(jnp.bfloat16)

    taps = tuple((dr * Ws + dc, dr * 3 + dc) for dr in range(3) for dc in range(3))
    (out_flat,) = _conv_stride1_tiled(bands, wstack, b, (taps,), th, Ws, gdn, out_dtype)
    return out_flat.reshape(B, Ho_pad, Ws, Cout)[:, :Ho, :Wo, :]


# ----------------------------------------------------------------------------
# ConvTranspose 5x5 / stride 2 / pad 2 / output_padding 1
# Sub-pixel decomposition: 4 output-parity branches (no zero-stuffed input).
# ----------------------------------------------------------------------------
def _deconv5x5_s2(x, w, b, gdn=None, out_dtype=jnp.bfloat16):
    """x: (B, H, W, Ci).  w: (Ci, Cout, 5, 5) PyTorch ConvTranspose2d layout."""
    B, H, W, Ci = x.shape
    Cout = w.shape[1]
    Cp = max(8, Cout)                   # pad narrow output channels (last layer: 3)
    Ws = W + 2
    th, nt = _choose_tile(H, Ws)
    H_pad = nt * th

    xp = jnp.pad(x.astype(jnp.bfloat16), ((0, 0), (1, H_pad + 2 - H), (1, 1), (0, 0)))
    bands = _make_bands(xp, th, nt)

    wt = jnp.transpose(w, (2, 3, 0, 1))                              # (5,5,Ci,Cout)
    bias = b
    if Cp != Cout:
        assert gdn is None
        wt = jnp.pad(wt, ((0, 0), (0, 0), (0, 0), (0, Cp - Cout)))
        bias = jnp.pad(b, (0, Cp - Cout))

    # Tap tables per output parity branch: (row_off, col_off, (kh, kw)).
    ee = [(a, c, (4 - 2 * a, 4 - 2 * c)) for a in range(3) for c in range(3)]
    eo = [(a, 1 + c, (4 - 2 * a, 3 - 2 * c)) for a in range(3) for c in range(2)]
    oe = [(1 + a, c, (3 - 2 * a, 4 - 2 * c)) for a in range(2) for c in range(3)]
    oo = [(1 + a, 1 + c, (3 - 2 * a, 3 - 2 * c)) for a in range(2) for c in range(2)]
    all_taps = ee + eo + oe + oo
    wstack = jnp.stack([wt[kh, kw] for (_, _, (kh, kw)) in all_taps]).astype(jnp.bfloat16)

    branches, k = [], 0
    for tl in (ee, eo, oe, oo):
        branches.append(tuple((ro * Ws + co, k + i) for i, (ro, co, _) in enumerate(tl)))
        k += len(tl)

    outs = _conv_stride1_tiled(bands, wstack, bias, tuple(branches), th, Ws, gdn, out_dtype)
    o_ee, o_eo, o_oe, o_oo = [o.reshape(B, H_pad, Ws, Cp)[:, :H, :W, :] for o in outs]

    # TODO(synk): parity interleave is still an XLA pass; fusing it into the stores
    # (strided sublane writes into a (B,2H,2W,Cp) out block) is a further win.
    row_even = jnp.stack([o_ee, o_eo], axis=3).reshape(B, H, 2 * W, Cp)
    row_odd = jnp.stack([o_oe, o_oo], axis=3).reshape(B, H, 2 * W, Cp)
    out = jnp.stack([row_even, row_odd], axis=2).reshape(B, 2 * H, 2 * W, Cp)
    return out[..., :Cout]


# ----------------------------------------------------------------------------
# Factorized (Balle) entropy bottleneck: per-channel monotone MLP cumulative,
# likelihood = |sigmoid(c(x+.5)) - sigmoid(c(x-.5))|, lower-bounded.
# The three bottlenecks (hx / hy / w) are merged into one kernel along channels.
# TODO(synk): exact `entropy_model.EntropyBottleneck` source not provided; this is
# the standard factorized-prior formulation with filters=(3,3,3), eval-mode.
# ----------------------------------------------------------------------------
_EB_DIMS = ((1, 3), (3, 3), (3, 3), (3, 1))


def _eb_kernel(x_ref, q_ref, s0, s1, s2, s3, b0, b1, b2, b3, f0, f1, f2,
               xt_ref, lik_ref):
    sps = (s0, s1, s2, s3)   # softplus(H_k), precomputed outside the kernel
    bs = (b0, b1, b2, b3)
    fs = (f0, f1, f2)        # tanh(a_k),     precomputed outside the kernel
    x = x_ref[...]
    xt = jnp.where(q_ref[...] > 0.5, jnp.round(x), x)

    def cumulative(v):
        u = [v]
        for k, (din, dout) in enumerate(_EB_DIMS):
            nu = []
            for o in range(dout):
                acc = bs[k][o:o + 1, :]
                for i in range(din):
                    acc = acc + sps[k][o * din + i:o * din + i + 1, :] * u[i]
                if k < len(_EB_DIMS) - 1:
                    acc = acc + fs[k][o:o + 1, :] * jnp.tanh(acc)
                nu.append(acc)
            u = nu
        return u[0]

    lower = cumulative(xt - 0.5)
    upper = cumulative(xt + 0.5)
    sgn = -jnp.sign(lower + upper)
    lik = jnp.abs(jax.nn.sigmoid(sgn * upper) - jax.nn.sigmoid(sgn * lower))
    xt_ref[...] = xt
    lik_ref[...] = jnp.maximum(lik, 1e-9)


def _entropy_bottleneck_merged(latents, eb_params, quantize_flags):
    """latents: list of (B,H,W,C) f32; one pallas_call over channels of all sources."""
    B, H, W, C = latents[0].shape
    n_src = len(latents)
    C3 = n_src * C
    xcat = jnp.concatenate([l.astype(jnp.float32).reshape(-1, C) for l in latents],
                           axis=-1)
    M = xcat.shape[0]

    sps, bcat, ths = [], [], []
    for k in range(len(_EB_DIMS)):
        sps.append(jnp.concatenate([jax.nn.softplus(p[0][k]) for p in eb_params], axis=-1))
        bcat.append(jnp.concatenate([p[1][k] for p in eb_params], axis=-1))
    for k in range(len(_EB_DIMS) - 1):
        ths.append(jnp.concatenate([jnp.tanh(p[2][k]) for p in eb_params], axis=-1))
    qmask = jnp.concatenate(
        [jnp.full((1, C), 1.0 if q else 0.0, jnp.float32) for q in quantize_flags],
        axis=-1)

    TM = min(256, _round_up(M, 8))
    Mp = _round_up(M, TM)
    if Mp != M:
        xcat = jnp.pad(xcat, ((0, Mp - M), (0, 0)))

    row = pl.BlockSpec((TM, C3), lambda i: (i, 0))
    const = lambda a: pl.BlockSpec(a.shape, lambda i: (0, 0))

    xt, lik = pl.pallas_call(
        _eb_kernel,
        grid=(Mp // TM,),
        in_specs=[row, const(qmask)] + [const(a) for a in sps]
                 + [const(a) for a in bcat] + [const(a) for a in ths],
        out_specs=(row, row),
        out_shape=(jax.ShapeDtypeStruct((Mp, C3), jnp.float32),
                   jax.ShapeDtypeStruct((Mp, C3), jnp.float32)),
        compiler_params=pltpu.CompilerParams(dimension_semantics=("parallel",)),
    )(xcat, qmask, *sps, *bcat, *ths)

    xt, lik = xt[:M], lik[:M]
    res = []
    for s in range(n_src):
        sl = slice(s * C, (s + 1) * C)
        res.append((xt[:, sl].reshape(B, H, W, C), lik[:, sl].reshape(B, H, W, C)))
    return res


# ----------------------------------------------------------------------------
# Model: parameter init + forward
# ----------------------------------------------------------------------------
def build_params(key, num_filters=32):
    ks = iter(jax.random.split(key, 160))

    def conv(cin, cout):
        return (0.05 * jax.random.normal(next(ks), (cout, cin, 5, 5), jnp.float32),
                0.01 * jax.random.normal(next(ks), (cout,), jnp.float32))

    def deconv(cin, cout):
        return (0.05 * jax.random.normal(next(ks), (cin, cout, 5, 5), jnp.float32),
                0.01 * jax.random.normal(next(ks), (cout,), jnp.float32))

    def gdn_p(c):
        # asymmetric positive gamma / beta (exercises the GDN orientation)
        gamma = 0.01 + 0.09 * jax.random.uniform(next(ks), (c, c), jnp.float32)
        beta = 0.5 + 0.5 * jax.random.uniform(next(ks), (c,), jnp.float32)
        return gamma, beta

    def enc(nf):
        return {"conv": [conv(3, nf)] + [conv(nf, nf) for _ in range(3)],
                "gdn": [gdn_p(nf) for _ in range(3)]}

    def dec(nf):
        return {"deconv": [deconv(2 * nf, nf)] + [deconv(nf, nf) for _ in range(2)]
                          + [deconv(nf, 3)],
                "igdn": [gdn_p(nf) for _ in range(3)]}

    def eb(nf):
        minit = math.log(math.expm1(1.0))
        mats = [jnp.full((dout * din, nf), minit, jnp.float32) for din, dout in _EB_DIMS]
        bs = [jax.random.uniform(next(ks), (dout, nf), jnp.float32, -0.5, 0.5)
              for _, dout in _EB_DIMS]
        fs = [jnp.zeros((dout, nf), jnp.float32) for _, dout in _EB_DIMS[:3]]
        return (mats, bs, fs)

    nf = num_filters
    return {"x": enc(nf), "cor": enc(nf), "w": enc(nf),
            "dec_x": dec(nf), "dec_cor": dec(nf),
            "eb_hx": eb(nf), "eb_hy": eb(nf), "eb_w": eb(nf)}


def _encode_branch(x, p):
    for k in range(3):
        gamma, beta = p["gdn"][k]
        x = _conv5x5_s2(x, p["conv"][k][0], p["conv"][k][1],
                        gdn=(gamma, beta, False), out_dtype=jnp.bfloat16)
    return _conv5x5_s2(x, p["conv"][3][0], p["conv"][3][1],
                       gdn=None, out_dtype=jnp.float32)


def _decode_branch(h, w, p):
    x = jnp.concatenate([h, w], axis=-1)
    for k in range(3):
        gamma, beta = p["igdn"][k]
        x = _deconv5x5_s2(x, p["deconv"][k][0], p["deconv"][k][1],
                          gdn=(gamma, beta, True), out_dtype=jnp.bfloat16)
    return _deconv5x5_s2(x, p["deconv"][3][0], p["deconv"][3][1],
                         gdn=None, out_dtype=jnp.float32)


def forward(params, x_nchw, y_nchw):
    """Eval-mode forward of DistributedAutoEncoder (NCHW in / NCHW out)."""
    x = jnp.transpose(x_nchw, (0, 2, 3, 1))
    y = jnp.transpose(y_nchw, (0, 2, 3, 1))

    w = _encode_branch(y, params["w"])
    # TODO(synk): training-mode Gaussian noise (sqrt(0.001)*randn) on w skipped (eval).
    hx = _encode_branch(x, params["x"])
    hy = _encode_branch(y, params["cor"])

    (hx_tilde, x_lik), (hy_tilde, y_lik), (_, w_lik) = _entropy_bottleneck_merged(
        [hx, hy, w],
        [params["eb_hx"], params["eb_hy"], params["eb_w"]],
        [True, False, False])

    x_tilde = _decode_branch(hx_tilde, w, params["dec_x"])
    y_tilde = _decode_branch(hy_tilde, w, params["dec_cor"])

    to_nchw = lambda t: jnp.transpose(t, (0, 3, 1, 2))
    return (to_nchw(x_tilde), to_nchw(y_tilde),
            to_nchw(x_lik), to_nchw(y_lik), to_nchw(w_lik))


# ----------------------------------------------------------------------------
# XLA reference implementations (used only for numerical validation in __main__)
# ----------------------------------------------------------------------------
def _ref_gdn(out, gdn):
    gamma, beta, inverse = gdn
    z = jnp.einsum("bhwc,dc->bhwd", out * out, gamma,
                   precision=jax.lax.Precision.HIGHEST) + beta
    return out * (jnp.sqrt(z) if inverse else jax.lax.rsqrt(z))


def _ref_conv(x, w, b, gdn=None):
    out = jax.lax.conv_general_dilated(
        x, jnp.transpose(w, (2, 3, 1, 0)), window_strides=(2, 2),
        padding=((2, 2), (2, 2)), dimension_numbers=("NHWC", "HWIO", "NHWC"),
        precision=jax.lax.Precision.HIGHEST) + b
    return out if gdn is None else _ref_gdn(out, gdn)


def _ref_deconv(x, w, b, gdn=None):
    wf = jnp.transpose(w[:, :, ::-1, ::-1], (2, 3, 0, 1))   # flipped, HWIO
    out = jax.lax.conv_general_dilated(
        x, wf, window_strides=(1, 1), padding=((2, 3), (2, 3)),
        lhs_dilation=(2, 2), dimension_numbers=("NHWC", "HWIO", "NHWC"),
        precision=jax.lax.Precision.HIGHEST) + b
    return out if gdn is None else _ref_gdn(out, gdn)


def _assert_close(name, got, want, tol):
    err = float(jnp.max(jnp.abs(got.astype(jnp.float32) - want)))
    scale = float(jnp.max(jnp.abs(want)))
    limit = tol * max(1.0, scale)
    assert err <= limit, f"{name}: max err {err:.3e} > {limit:.3e}"


if __name__ == "__main__":
    NUM_FILTERS = 32      # module default is 192; small for the test
    B, H, W = 2, 32, 32

    key = jax.random.PRNGKey(0)
    kp, kx, ky, kc = jax.random.split(key, 4)
    params = build_params(kp, num_filters=NUM_FILTERS)
    x = jax.random.normal(kx, (B, 3, H, W), jnp.float32)
    y = jax.random.normal(ky, (B, 3, H, W), jnp.float32)

    # ---- numerical checks of the Pallas building blocks vs XLA references ----
    nf = NUM_FILTERS
    kk = iter(jax.random.split(kc, 8))
    bf = lambda a: a.astype(jnp.bfloat16).astype(jnp.float32)

    cx = jax.random.normal(next(kk), (2, 16, 16, 3), jnp.float32)
    cw, cb = params["x"]["conv"][0]
    gamma, beta = params["x"]["gdn"][0]
    _assert_close("conv5x5_s2+GDN",
                  _conv5x5_s2(cx, cw, cb, gdn=(gamma, beta, False),
                              out_dtype=jnp.float32),
                  _ref_conv(bf(cx), bf(cw), cb, gdn=(gamma, beta, False)), 2e-2)
    _assert_close("conv5x5_s2",
                  _conv5x5_s2(cx, cw, cb, gdn=None, out_dtype=jnp.float32),
                  _ref_conv(bf(cx), bf(cw), cb, gdn=None), 2e-2)

    dx = jax.random.normal(next(kk), (2, 4, 4, 2 * nf), jnp.float32)
    dw, db = params["dec_x"]["deconv"][0]
    igamma, ibeta = params["dec_x"]["igdn"][0]
    _assert_close("deconv5x5_s2+IGDN",
                  _deconv5x5_s2(dx, dw, db, gdn=(igamma, ibeta, True),
                                out_dtype=jnp.float32),
                  _ref_deconv(bf(dx), bf(dw), db, gdn=(igamma, ibeta, True)), 2e-2)

    dx2 = jax.random.normal(next(kk), (2, 8, 8, nf), jnp.float32)
    dw2, db2 = params["dec_x"]["deconv"][3]
    _assert_close("deconv5x5_s2(3ch)",
                  _deconv5x5_s2(dx2, dw2, db2, gdn=None, out_dtype=jnp.float32),
                  _ref_deconv(bf(dx2), bf(dw2), db2, gdn=None), 2e-2)

    # ---- full forward ---------------------------------------------------------
    fwd = jax.jit(lambda a, b_: forward(params, a, b_))
    outs = fwd(x, y)
    jax.block_until_ready(outs)

    x_tilde, y_tilde, x_lik, y_lik, w_lik = outs
    assert x_tilde.shape == (B, 3, H, W)
    assert y_tilde.shape == (B, 3, H, W)
    assert x_lik.shape == (B, NUM_FILTERS, H // 16, W // 16)
    assert y_lik.shape == (B, NUM_FILTERS, H // 16, W // 16)
    assert w_lik.shape == (B, NUM_FILTERS, H // 16, W // 16)
    assert all(bool(jnp.all(jnp.isfinite(o.astype(jnp.float32)))) for o in outs)
    print("KERNEL_OK")
</pallas_src>

<mosaic_0001>
module attributes {stable_mosaic.version = 11 : i64} {
  func.func @kernel(%arg0: i32, %arg1: i32, %arg2: memref<1x1x110x12xbf16, #tpu.memory_space<vmem>>, %arg3: memref<9x12x32xbf16, #tpu.memory_space<vmem>>, %arg4: memref<1x32xf32, #tpu.memory_space<vmem>>, %arg5: memref<32x32xf32, #tpu.memory_space<vmem>>, %arg6: memref<1x32xf32, #tpu.memory_space<vmem>>, %arg7: memref<1x80x32xf32, #tpu.memory_space<vmem>>, %arg8: memref<80x32xf32, #tpu.memory_space<vmem>>) attributes {dimension_semantics = [#tpu.dimension_semantics<parallel>, #tpu.dimension_semantics<parallel>], iteration_bounds = array<i64: 2, 1>, scalar_prefetch = 0 : i64, scratch_operands = 1 : i64, tpu.core_type = #tpu.core_type<tc>, window_params = [{transform_indices = @transform_0, window_bounds = array<i64: 1, 1, 110, 12>}, {pipeline_mode = #tpu.pipeline_mode<synchronous>, transform_indices = @transform_1, window_bounds = array<i64: 9, 12, 32>}, {pipeline_mode = #tpu.pipeline_mode<synchronous>, transform_indices = @transform_2, window_bounds = array<i64: 1, 32>}, {pipeline_mode = #tpu.pipeline_mode<synchronous>, transform_indices = @transform_3, window_bounds = array<i64: 32, 32>}, {pipeline_mode = #tpu.pipeline_mode<synchronous>, transform_indices = @transform_4, window_bounds = array<i64: 1, 32>}, {transform_indices = @transform_5, window_bounds = array<i64: 1, 80, 32>}]} {
    %c0 = arith.constant 0 : index
    %c0_0 = arith.constant 0 : index
    %0 = vector.load %arg4[%c0, %c0_0] : memref<1x32xf32, #tpu.memory_space<vmem>>, vector<1x32xf32>
    %c0_1 = arith.constant 0 : index
    %c0_2 = arith.constant 0 : index
    %c0_3 = arith.constant 0 : index
    %c0_4 = arith.constant 0 : index
    %1 = vector.load %arg2[%c0_1, %c0_2, %c0_3, %c0_4] : memref<1x1x110x12xbf16, #tpu.memory_space<vmem>>, vector<1x1x80x12xbf16>
    %2 = vector.shape_cast %1 : vector<1x1x80x12xbf16> to vector<80x12xbf16>
    %c0_5 = arith.constant 0 : index
    %c0_6 = arith.constant 0 : index
    %c0_7 = arith.constant 0 : index
    %3 = vector.load %arg3[%c0_5, %c0_6, %c0_7] : memref<9x12x32xbf16, #tpu.memory_space<vmem>>, vector<1x12x32xbf16>
    %4 = vector.shape_cast %3 : vector<1x12x32xbf16> to vector<12x32xbf16>
    %cst = arith.constant dense<0.000000e+00> : vector<80x32xf32>
    %5 = tpu.matmul %2, %4, %cst {dimension_numbers = #tpu.dot_dimension_numbers<[1], [0], [0], [1], [0, 0, 1, 1], [], []>} : vector<80x12xbf16>, vector<12x32xbf16>, vector<80x32xf32> -> vector<80x32xf32>
    %c0_8 = arith.constant 0 : index
    %c0_9 = arith.constant 0 : index
    %6 = vector.load %arg8[%c0_8, %c0_9] : memref<80x32xf32, #tpu.memory_space<vmem>>, vector<80x32xf32>
    tpu.vector_store %arg8[%c0_8, %c0_9], %5 {strides = array<i32>} : memref<80x32xf32, #tpu.memory_space<vmem>>, vector<80x32xf32>,
    %c0_10 = arith.constant 0 : index
    %c0_11 = arith.constant 0 : index
    %c1 = arith.constant 1 : index
    %c0_12 = arith.constant 0 : index
    %7 = vector.load %arg2[%c0_10, %c0_11, %c1, %c0_12] : memref<1x1x110x12xbf16, #tpu.memory_space<vmem>>, vector<1x1x80x12xbf16>
    %8 = vector.shape_cast %7 : vector<1x1x80x12xbf16> to vector<80x12xbf16>
    %c1_13 = arith.constant 1 : index
    %c0_14 = arith.constant 0 : index
    %c0_15 = arith.constant 0 : index
    %9 = vector.load %arg3[%c1_13, %c0_14, %c0_15] : memref<9x12x32xbf16, #tpu.memory_space<vmem>>, vector<1x12x32xbf16>
    %10 = vector.shape_cast %9 : vector<1x12x32xbf16> to vector<12x32xbf16>
    %cst_16 = arith.constant dense<0.000000e+00> : vector<80x32xf32>
    %11 = tpu.matmul %8, %10, %cst_16 {dimension_numbers = #tpu.dot_dimension_numbers<[1], [0], [0], [1], [0, 0, 1, 1], [], []>} : vector<80x12xbf16>, vector<12x32xbf16>, vector<80x32xf32> -> vector<80x32xf32>
    %c0_17 = arith.constant 0 : index
    %c0_18 = arith.constant 0 : index
    %12 = vector.load %arg8[%c0_17, %c0_18] : memref<80x32xf32, #tpu.memory_space<vmem>>, vector<80x32xf32>
    %13 = arith.addf %12, %11 : vector<80x32xf32>
    %c0_19 = arith.constant 0 : index
    %c0_20 = arith.constant 0 : index
    %14 = vector.load %arg8[%c0_19, %c0_20] : memref<80x32xf32, #tpu.memory_space<vmem>>, vector<80x32xf32>
    tpu.vector_store %arg8[%c0_19, %c0_20], %13 {strides = array<i32>} : memref<80x32xf32, #tpu.memory_space<vmem>>, vector<80x32xf32>,
    %c0_21 = arith.constant 0 : index
    %c0_22 = arith.constant 0 : index
    %c2 = arith.constant 2 : index
    %c0_23 = arith.constant 0 : index
    %15 = vector.load %arg2[%c0_21, %c0_22, %c2, %c0_23] : memref<1x1x110x12xbf16, #tpu.memory_space<vmem>>, vector<1x1x80x12xbf16>
    %16 = vector.shape_cast %15 : vector<1x1x80x12xbf16> to vector<80x12xbf16>
    %c2_24 = arith.constant 2 : index
    %c0_25 = arith.constant 0 : index
    %c0_26 = arith.constant 0 : index
    %17 = vector.load %arg3[%c2_24, %c0_25, %c0_26] : memref<9x12x32xbf16, #tpu.memory_space<vmem>>, vector<1x12x32xbf16>
    %18 = vector.shape_cast %17 : vector<1x12x32xbf16> to vector<12x32xbf16>
    %cst_27 = arith.constant dense<0.000000e+00> : vector<80x32xf32>
    %19 = tpu.matmul %16, %18, %cst_27 {dimension_numbers = #tpu.dot_dimension_numbers<[1], [0], [0], [1], [0, 0, 1, 1], [], []>} : vector<80x12xbf16>, vector<12x32xbf16>, vector<80x32xf32> -> vector<80x32xf32>
    %c0_28 = arith.constant 0 : index
    %c0_29 = arith.constant 0 : index
    %20 = vector.load %arg8[%c0_28, %c0_29] : memref<80x32xf32, #tpu.memory_space<vmem>>, vector<80x32xf32>
    %21 = arith.addf %20, %19 : vector<80x32xf32>
    %c0_30 = arith.constant 0 : index
    %c0_31 = arith.constant 0 : index
    %22 = vector.load %arg8[%c0_30, %c0_31] : memref<80x32xf32, #tpu.memory_space<vmem>>, vector<80x32xf32>
    tpu.vector_store %arg8[%c0_30, %c0_31], %21 {strides = array<i32>} : memref<80x32xf32, #tpu.memory_space<vmem>>, vector<80x32xf32>,
    %c0_32 = arith.constant 0 : index
    %c0_33 = arith.constant 0 : index
    %c10 = arith.constant 10 : index
    %c0_34 = arith.constant 0 : index
    %23 = vector.load %arg2[%c0_32, %c0_33, %c10, %c0_34] : memref<1x1x110x12xbf16, #tpu.memory_space<vmem>>, vector<1x1x80x12xbf16>
    %24 = vector.shape_cast %23 : vector<1x1x80x12xbf16> to vector<80x12xbf16>
    %c3 = arith.constant 3 : index
    %c0_35 = arith.constant 0 : index
    %c0_36 = arith.constant 0 : index
    %25 = vector.load %arg3[%c3, %c0_35, %c0_36] : memref<9x12x32xbf16, #tpu.memory_space<vmem>>, vector<1x12x32xbf16>
    %26 = vector.shape_cast %25 : vector<1x12x32xbf16> to vector<12x32xbf16>
    %cst_37 = arith.constant dense<0.000000e+00> : vector<80x32xf32>
    %27 = tpu.matmul %24, %26, %cst_37 {dimension_numbers = #tpu.dot_dimension_numbers<[1], [0], [0], [1], [0, 0, 1, 1], [], []>} : vector<80x12xbf16>, vector<12x32xbf16>, vector<80x32xf32> -> vector<80x32xf32>
    %c0_38 = arith.constant 0 : index
    %c0_39 = arith.constant 0 : index
    %28 = vector.load %arg8[%c0_38, %c0_39] : memref<80x32xf32, #tpu.memory_space<vmem>>, vector<80x32xf32>
    %29 = arith.addf %28, %27 : vector<80x32xf32>
    %c0_40 = arith.constant 0 : index
    %c0_41 = arith.constant 0 : index
    %30 = vector.load %arg8[%c0_40, %c0_41] : memref<80x32xf32, #tpu.memory_space<vmem>>, vector<80x32xf32>
    tpu.vector_store %arg8[%c0_40, %c0_41], %29 {strides = array<i32>} : memref<80x32xf32, #tpu.memory_space<vmem>>, vector<80x32xf32>,
    %c0_42 = arith.constant 0 : index
    %c0_43 = arith.constant 0 : index
    %c11 = arith.constant 11 : index
    %c0_44 = arith.constant 0 : index
    %31 = vector.load %arg2[%c0_42, %c0_43, %c11, %c0_44] : memref<1x1x110x12xbf16, #tpu.memory_space<vmem>>, vector<1x1x80x12xbf16>
    %32 = vector.shape_cast %31 : vector<1x1x80x12xbf16> to vector<80x12xbf16>
    %c4 = arith.constant 4 : index
    %c0_45 = arith.constant 0 : index
    %c0_46 = arith.constant 0 : index
    %33 = vector.load %arg3[%c4, %c0_45, %c0_46] : memref<9x12x32xbf16, #tpu.memory_space<vmem>>, vector<1x12x32xbf16>
    %34 = vector.shape_cast %33 : vector<1x12x32xbf16> to vector<12x32xbf16>
    %cst_47 = arith.constant dense<0.000000e+00> : vector<80x32xf32>
    %35 = tpu.matmul %32, %34, %cst_47 {dimension_numbers = #tpu.dot_dimension_numbers<[1], [0], [0], [1], [0, 0, 1, 1], [], []>} : vector<80x12xbf16>, vector<12x32xbf16>, vector<80x32xf32> -> vector<80x32xf32>
    %c0_48 = arith.constant 0 : index
    %c0_49 = arith.constant 0 : index
    %36 = vector.load %arg8[%c0_48, %c0_49] : memref<80x32xf32, #tpu.memory_space<vmem>>, vector<80x32xf32>
    %37 = arith.addf %36, %35 : vector<80x32xf32>
    %c0_50 = arith.constant 0 : index
    %c0_51 = arith.constant 0 : index
    %38 = vector.load %arg8[%c0_50, %c0_51] : memref<80x32xf32, #tpu.memory_space<vmem>>, vector<80x32xf32>
    tpu.vector_store %arg8[%c0_50, %c0_51], %37 {strides = array<i32>} : memref<80x32xf32, #tpu.memory_space<vmem>>, vector<80x32xf32>,
    %c0_52 = arith.constant 0 : index
    %c0_53 = arith.constant 0 : index
    %c12 = arith.constant 12 : index
    %c0_54 = arith.constant 0 : index
    %39 = vector.load %arg2[%c0_52, %c0_53, %c12, %c0_54] : memref<1x1x110x12xbf16, #tpu.memory_space<vmem>>, vector<1x1x80x12xbf16>
    %40 = vector.shape_cast %39 : vector<1x1x80x12xbf16> to vector<80x12xbf16>
    %c5 = arith.constant 5 : index
    %c0_55 = arith.constant 0 : index
    %c0_56 = arith.constant 0 : index
    %41 = vector.load %arg3[%c5, %c0_55, %c0_56] : memref<9x12x32xbf16, #tpu.memory_space<vmem>>, vector<1x12x32xbf16>
    %42 = vector.shape_cast %41 : vector<1x12x32xbf16> to vector<12x32xbf16>
    %cst_57 = arith.constant dense<0.000000e+00> : vector<80x32xf32>
    %43 = tpu.matmul %40, %42, %cst_57 {dimension_numbers = #tpu.dot_dimension_numbers<[1], [0], [0], [1], [0, 0, 1, 1], [], []>} : vector<80x12xbf16>, vector<12x32xbf16>, vector<80x32xf32> -> vector<80x32xf32>
    %c0_58 = arith.constant 0 : index
    %c0_59 = arith.constant 0 : index
    %44 = vector.load %arg8[%c0_58, %c0_59] : memref<80x32xf32, #tpu.memory_space<vmem>>, vector<80x32xf32>
    %45 = arith.addf %44, %43 : vector<80x32xf32>
    %c0_60 = arith.constant 0 : index
    %c0_61 = arith.constant 0 : index
    %46 = vector.load %arg8[%c0_60, %c0_61] : memref<80x32xf32, #tpu.memory_space<vmem>>, vector<80x32xf32>
    tpu.vector_store %arg8[%c0_60, %c0_61], %45 {strides = array<i32>} : memref<80x32xf32, #tpu.memory_space<vmem>>, vector<80x32xf32>,
    %c0_62 = arith.constant 0 : index
    %c0_63 = arith.constant 0 : index
    %c20 = arith.constant 20 : index
    %c0_64 = arith.constant 0 : index
    %47 = vector.load %arg2[%c0_62, %c0_63, %c20, %c0_64] : memref<1x1x110x12xbf16, #tpu.memory_space<vmem>>, vector<1x1x80x12xbf16>
    %48 = vector.shape_cast %47 : vector<1x1x80x12xbf16> to vector<80x12xbf16>
    %c6 = arith.constant 6 : index
    %c0_65 = arith.constant 0 : index
    %c0_66 = arith.constant 0 : index
    %49 = vector.load %arg3[%c6, %c0_65, %c0_66] : memref<9x12x32xbf16, #tpu.memory_space<vmem>>, vector<1x12x32xbf16>
    %50 = vector.shape_cast %49 : vector<1x12x32xbf16> to vector<12x32xbf16>
    %cst_67 = arith.constant dense<0.000000e+00> : vector<80x32xf32>
    %51 = tpu.matmul %48, %50, %cst_67 {dimension_numbers = #tpu.dot_dimension_numbers<[1], [0], [0], [1], [0, 0, 1, 1], [], []>} : vector<80x12xbf16>, vector<12x32xbf16>, vector<80x32xf32> -> vector<80x32xf32>
    %c0_68 = arith.constant 0 : index
    %c0_69 = arith.constant 0 : index
    %52 = vector.load %arg8[%c0_68, %c0_69] : memref<80x32xf32, #tpu.memory_space<vmem>>, vector<80x32xf32>
    %53 = arith.addf %52, %51 : vector<80x32xf32>
    %c0_70 = arith.constant 0 : index
    %c0_71 = arith.constant 0 : index
    %54 = vector.load %arg8[%c0_70, %c0_71] : memref<80x32xf32, #tpu.memory_space<vmem>>, vector<80x32xf32>
    tpu.vector_store %arg8[%c0_70, %c0_71], %53 {strides = array<i32>} : memref<80x32xf32, #tpu.memory_space<vmem>>, vector<80x32xf32>,
    %c0_72 = arith.constant 0 : index
    %c0_73 = arith.constant 0 : index
    %c21 = arith.constant 21 : index
    %c0_74 = arith.constant 0 : index
    %55 = vector.load %arg2[%c0_72, %c0_73, %c21, %c0_74] : memref<1x1x110x12xbf16, #tpu.memory_space<vmem>>, vector<1x1x80x12xbf16>
    %56 = vector.shape_cast %55 : vector<1x1x80x12xbf16> to vector<80x12xbf16>
    %c7 = arith.constant 7 : index
    %c0_75 = arith.constant 0 : index
    %c0_76 = arith.constant 0 : index
    %57 = vector.load %arg3[%c7, %c0_75, %c0_76] : memref<9x12x32xbf16, #tpu.memory_space<vmem>>, vector<1x12x32xbf16>
    %58 = vector.shape_cast %57 : vector<1x12x32xbf16> to vector<12x32xbf16>
    %cst_77 = arith.constant dense<0.000000e+00> : vector<80x32xf32>
    %59 = tpu.matmul %56, %58, %cst_77 {dimension_numbers = #tpu.dot_dimension_numbers<[1], [0], [0], [1], [0, 0, 1, 1], [], []>} : vector<80x12xbf16>, vector<12x32xbf16>, vector<80x32xf32> -> vector<80x32xf32>
    %c0_78 = arith.constant 0 : index
    %c0_79 = arith.constant 0 : index
    %60 = vector.load %arg8[%c0_78, %c0_79] : memref<80x32xf32, #tpu.memory_space<vmem>>, vector<80x32xf32>
    %61 = arith.addf %60, %59 : vector<80x32xf32>
    %c0_80 = arith.constant 0 : index
    %c0_81 = arith.constant 0 : index
    %62 = vector.load %arg8[%c0_80, %c0_81] : memref<80x32xf32, #tpu.memory_space<vmem>>, vector<80x32xf32>
    tpu.vector_store %arg8[%c0_80, %c0_81], %61 {strides = array<i32>} : memref<80x32xf32, #tpu.memory_space<vmem>>, vector<80x32xf32>,
    %c0_82 = arith.constant 0 : index
    %c0_83 = arith.constant 0 : index
    %c22 = arith.constant 22 : index
    %c0_84 = arith.constant 0 : index
    %63 = vector.load %arg2[%c0_82, %c0_83, %c22, %c0_84] : memref<1x1x110x12xbf16, #tpu.memory_space<vmem>>, vector<1x1x80x12xbf16>
    %64 = vector.shape_cast %63 : vector<1x1x80x12xbf16> to vector<80x12xbf16>
    %c8 = arith.constant 8 : index
    %c0_85 = arith.constant 0 : index
    %c0_86 = arith.constant 0 : index
    %65 = vector.load %arg3[%c8, %c0_85, %c0_86] : memref<9x12x32xbf16, #tpu.memory_space<vmem>>, vector<1x12x32xbf16>
    %66 = vector.shape_cast %65 : vector<1x12x32xbf16> to vector<12x32xbf16>
    %cst_87 = arith.constant dense<0.000000e+00> : vector<80x32xf32>
    %67 = tpu.matmul %64, %66, %cst_87 {dimension_numbers = #tpu.dot_dimension_numbers<[1], [0], [0], [1], [0, 0, 1, 1], [], []>} : vector<80x12xbf16>, vector<12x32xbf16>, vector<80x32xf32> -> vector<80x32xf32>
    %c0_88 = arith.constant 0 : index
    %c0_89 = arith.constant 0 : index
    %68 = vector.load %arg8[%c0_88, %c0_89] : memref<80x32xf32, #tpu.memory_space<vmem>>, vector<80x32xf32>
    %69 = arith.addf %68, %67 : vector<80x32xf32>
    %c0_90 = arith.constant 0 : index
    %c0_91 = arith.constant 0 : index
    %70 = vector.load %arg8[%c0_90, %c0_91] : memref<80x32xf32, #tpu.memory_space<vmem>>, vector<80x32xf32>
    tpu.vector_store %arg8[%c0_90, %c0_91], %69 {strides = array<i32>} : memref<80x32xf32, #tpu.memory_space<vmem>>, vector<80x32xf32>,
    %c0_92 = arith.constant 0 : index
    %c0_93 = arith.constant 0 : index
    %71 = vector.load %arg8[%c0_92, %c0_93] : memref<80x32xf32, #tpu.memory_space<vmem>>, vector<80x32xf32>
    %72 = vector.broadcast %0 : vector<1x32xf32> to vector<80x32xf32>
    %73 = arith.addf %71, %72 : vector<80x32xf32>
    %74 = arith.mulf %73, %73 : vector<80x32xf32>
    %c0_94 = arith.constant 0 : index
    %c0_95 = arith.constant 0 : index
    %75 = vector.load %arg5[%c0_94, %c0_95] : memref<32x32xf32, #tpu.memory_space<vmem>>, vector<32x32xf32>
    %cst_96 = arith.constant dense<0.000000e+00> : vector<80x32xf32>
    %76 = tpu.matmul %74, %75, %cst_96 {dimension_numbers = #tpu.dot_dimension_numbers<[1], [0], [0], [1], [0, 0, 1, 1], [], []>} : vector<80x32xf32>, vector<32x32xf32>, vector<80x32xf32> -> vector<80x32xf32>
    %c0_97 = arith.constant 0 : index
    %c0_98 = arith.constant 0 : index
    %77 = vector.load %arg6[%c0_97, %c0_98] : memref<1x32xf32, #tpu.memory_space<vmem>>, vector<1x32xf32>
    %78 = vector.broadcast %77 : vector<1x32xf32> to vector<80x32xf32>
    %79 = arith.addf %76, %78 : vector<80x32xf32>
    %80 = math.rsqrt %79 : vector<80x32xf32>
    %81 = arith.mulf %73, %80 : vector<80x32xf32>
    %c0_99 = arith.constant 0 : index
    %c0_100 = arith.constant 0 : index
    %c0_101 = arith.constant 0 : index
    %82 = vector.load %arg7[%c0_99, %c0_100, %c0_101] : memref<1x80x32xf32, #tpu.memory_space<vmem>>, vector<1x80x32xf32>
    %83 = vector.shape_cast %82 : vector<1x80x32xf32> to vector<80x32xf32>
    %84 = vector.shape_cast %81 : vector<80x32xf32> to vector<1x80x32xf32>
    tpu.vector_store %arg7[%c0_99, %c0_100, %c0_101], %84 {strides = array<i32>} : memref<1x80x32xf32, #tpu.memory_space<vmem>>, vector<1x80x32xf32>,
    return
  }
  func.func @transform_0(%arg0: i32, %arg1: i32) -> (i32, i32, i32, i32) {
    %c0_i32 = arith.constant 0 : i32
    %c0_i32_0 = arith.constant 0 : i32
    %c0_i32_1 = arith.constant 0 : i32
    return %arg0, %arg1, %c0_i32, %c0_i32_0 : i32, i32, i32, i32
  }
  func.func @transform_1(%arg0: i32, %arg1: i32) -> (i32, i32, i32) {
    %c0_i32 = arith.constant 0 : i32
    %c0_i32_0 = arith.constant 0 : i32
    %c0_i32_1 = arith.constant 0 : i32
    %c0_i32_2 = arith.constant 0 : i32
    return %c0_i32, %c0_i32_0, %c0_i32_1 : i32, i32, i32
  }
  func.func @transform_2(%arg0: i32, %arg1: i32) -> (i32, i32) {
    %c0_i32 = arith.constant 0 : i32
    %c0_i32_0 = arith.constant 0 : i32
    %c0_i32_1 = arith.constant 0 : i32
    return %c0_i32, %c0_i32_0 : i32, i32
  }
  func.func @transform_3(%arg0: i32, %arg1: i32) -> (i32, i32) {
    %c0_i32 = arith.constant 0 : i32
    %c0_i32_0 = arith.constant 0 : i32
    %c0_i32_1 = arith.constant 0 : i32
    return %c0_i32, %c0_i32_0 : i32, i32
  }
  func.func @transform_4(%arg0: i32, %arg1: i32) -> (i32, i32) {
    %c0_i32 = arith.constant 0 : i32
    %c0_i32_0 = arith.constant 0 : i32
    %c0_i32_1 = arith.constant 0 : i32
    return %c0_i32, %c0_i32_0 : i32, i32
  }
  func.func @transform_5(%arg0: i32, %arg1: i32) -> (i32, i32, i32) {
    %c0_i32 = arith.constant 0 : i32
    %c0_i32_0 = arith.constant 0 : i32
    return %arg0, %arg1, %c0_i32 : i32, i32, i32
  }
}

</mosaic_0001>

<llo_original>
// kernel: tpu_custom_call.1
$region0: #{tpu_custom_call.1}
  #allocation0 [shape = 'u32[]', space=smem, size = 0x4, offset = 0x4, fixed_abs, tag = 'smem constant byte address 0x4 - core index']
  #allocation1 [shape = 'u32[72,128]{1,0:T(1,128)}', space=vmem, size = 0x9000, scoped, tag = 'internal scratch']
  #allocation2 [shape = 'f32[80,32]{1,0:T(8,128)}', space=vmem, size = 0xa000, scoped, tag = 'scratch operand']
  %s0 = inlined_call_operand.vmem [shape: bf16[2,1,110,12], index: 0, kind: input, shape index: {}]
  %s1 = inlined_call_operand.vmem [shape: bf16[9,12,32], index: 1, kind: input, shape index: {}]
  %s2 = inlined_call_operand.vmem [shape: f32[1,32], index: 2, kind: input, shape index: {}]
  %s3 = inlined_call_operand.vmem [shape: f32[32,32], index: 3, kind: input, shape index: {}]
  %s4 = inlined_call_operand.vmem [shape: f32[1,32], index: 4, kind: input, shape index: {}]
  %s5 = inlined_call_operand.vmem [shape: f32[2,80,32], index: 5, kind: output, shape index: {}]
  %s6 = sld [smem:[#allocation0]]
  $region53: #{tpu_custom_call.1} parent=0
    _
  %s8 = ssub.s32 1, %s6
  %s9 = scalar_select 0, %s8, %s6
  loop: start=0, step=1, limit=4
  $region2: #{tpu_custom_call.1} parent=0 // loop_pre_header
    _
  $region3: #{tpu_custom_call.1} parent=0 // loop_header
    %s11 = sphi 0, %s15
    %p12 = scmp.ge.s32.totalorder %s11, 4
    %s18 = sphi 0, %s30
    %s19 = sphi 0, %s26
    %s20 = sphi 0, %s18
    %s21 = sphi 0, %s19
    %s22 = sphi 0, %s20
    %s23 = sphi 0, %s21
    %s35 = sphi 0, %s37
    %s38 = sphi 0, %s35
    %s39 = sphi 0, %s38
    %s55 = sphi 0, %s39
    %s59 = sphi 0, %s59
    %s61 = sphi 0, %s59
    %s62 = sphi 0, %s61
    %s76 = sphi 0, %s62
    %s80 = sphi 0, %s80
    %s82 = sphi 0, %s80
    %s83 = sphi 0, %s82
    %s97 = sphi 0, %s83
    %s101 = sphi 0, %s101
    %s103 = sphi 0, %s101
    %s104 = sphi 0, %s103
    %s118 = sphi 0, %s104
    %s122 = sphi 0, %s122
    %s124 = sphi 0, %s122
    %s125 = sphi 0, %s124
    %s139 = sphi 0, %s125
    %s147 = sphi 0, %s149
    %s150 = sphi 0, %s147
    %s151 = sphi 0, %s150
    %s167 = sphi 0, %s151
  $region4: #{tpu_custom_call.1} parent=0 // loop_header_branch
    %14 = sbr.rel (%p12) target = $region8
  $region5: #{tpu_custom_call.1} parent=0 // loop_body
    %s16 = ssub.s32 %s11, 1
    %s17 = ssub.s32 %s11, 2
    %s24 = sadd.s32 1, %s19
    %p25 = scmp.ge.s32.totalorder %s24, 1
    %s26 = scalar_select %p25, 0, %s24
    %s27 = sadd.s32 1, %s18
    %s28 = scalar_select %p25, %s27, %s18
    %p29 = scmp.ge.s32.totalorder %s28, 2
    %s30 = scalar_select %p29, 0, %s28
    %s31 = ssub.s32 %s18, %s30
    %s32 = ssub.s32 %s19, %s26
    %s33 = sor.u32 %s31, %s32
    %p34 = scmp.eq.s32.totalorder %s33, 0
    %s36 = sadd.s32 %s35, 1
    %s37 = scalar_select %p34, %s35, %s36
    %p40 = pneg %p34
    %p41 = scmp.eq.s32.totalorder %s11, 1
    %p42 = por %p40, %p41
    %p43 = scmp.ne.s32.totalorder %s35, %s38
    %p44 = scmp.eq.s32.totalorder %s11, 0
    %p45 = por %p43, %p44
    %p46 = scmp.ne.s32.totalorder %s35, %s38
    %p47 = scmp.eq.s32.totalorder %s16, 1
    %p48 = por %p46, %p47
    %p49 = scmp.ne.s32.totalorder %s38, %s39
    %p50 = scmp.eq.s32.totalorder %s16, 0
    %p51 = por %p49, %p50
    %p52 = scmp.ne.s32.totalorder %s38, %s39
    %p53 = scmp.eq.s32.totalorder %s17, 1
    %p54 = por %p52, %p53
    %p56 = scmp.ne.s32.totalorder %s39, %s55
    %p57 = scmp.eq.s32.totalorder %s17, 0
    %p58 = por %p56, %p57
    %s60 = sadd.s32 %s59, 1
    %p63 = scmp.eq.s32.totalorder %s11, 1
    %p64 = scmp.ne.s32.totalorder %s59, %s61
    %p65 = scmp.eq.s32.totalorder %s11, 0
    %p66 = por %p64, %p65
    %p67 = scmp.ne.s32.totalorder %s59, %s61
    %p68 = scmp.eq.s32.totalorder %s16, 1
    %p69 = por %p67, %p68
    %p70 = scmp.ne.s32.totalorder %s61, %s62
    %p71 = scmp.eq.s32.totalorder %s16, 0
    %p72 = por %p70, %p71
    %p73 = scmp.ne.s32.totalorder %s61, %s62
    %p74 = scmp.eq.s32.totalorder %s17, 1
    %p75 = por %p73, %p74
    %p77 = scmp.ne.s32.totalorder %s62, %s76
    %p78 = scmp.eq.s32.totalorder %s17, 0
    %p79 = por %p77, %p78
    %s81 = sadd.s32 %s80, 1
    %p84 = scmp.eq.s32.totalorder %s11, 1
    %p85 = scmp.ne.s32.totalorder %s80, %s82
    %p86 = scmp.eq.s32.totalorder %s11, 0
    %p87 = por %p85, %p86
    %p88 = scmp.ne.s32.totalorder %s80, %s82
    %p89 = scmp.eq.s32.totalorder %s16, 1
    %p90 = por %p88, %p89
    %p91 = scmp.ne.s32.totalorder %s82, %s83
    %p92 = scmp.eq.s32.totalorder %s16, 0
    %p93 = por %p91, %p92
    %p94 = scmp.ne.s32.totalorder %s82, %s83
    %p95 = scmp.eq.s32.totalorder %s17, 1
    %p96 = por %p94, %p95
    %p98 = scmp.ne.s32.totalorder %s83, %s97
    %p99 = scmp.eq.s32.totalorder %s17, 0
    %p100 = por %p98, %p99
    %s102 = sadd.s32 %s101, 1
    %p105 = scmp.eq.s32.totalorder %s11, 1
    %p106 = scmp.ne.s32.totalorder %s101, %s103
    %p107 = scmp.eq.s32.totalorder %s11, 0
    %p108 = por %p106, %p107
    %p109 = scmp.ne.s32.totalorder %s101, %s103
    %p110 = scmp.eq.s32.totalorder %s16, 1
    %p111 = por %p109, %p110
    %p112 = scmp.ne.s32.totalorder %s103, %s104
    %p113 = scmp.eq.s32.totalorder %s16, 0
    %p114 = por %p112, %p113
    %p115 = scmp.ne.s32.totalorder %s103, %s104
    %p116 = scmp.eq.s32.totalorder %s17, 1
    %p117 = por %p115, %p116
    %p119 = scmp.ne.s32.totalorder %s104, %s118
    %p120 = scmp.eq.s32.totalorder %s17, 0
    %p121 = por %p119, %p120
    %s123 = sadd.s32 %s122, 1
    %p126 = scmp.eq.s32.totalorder %s11, 1
    %p127 = scmp.ne.s32.totalorder %s122, %s124
    %p128 = scmp.eq.s32.totalorder %s11, 0
    %p129 = por %p127, %p128
    %p130 = scmp.ne.s32.totalorder %s122, %s124
    %p131 = scmp.eq.s32.totalorder %s16, 1
    %p132 = por %p130, %p131
    %p133 = scmp.ne.s32.totalorder %s124, %s125
    %p134 = scmp.eq.s32.totalorder %s16, 0
    %p135 = por %p133, %p134
    %p136 = scmp.ne.s32.totalorder %s124, %s125
    %p137 = scmp.eq.s32.totalorder %s17, 1
    %p138 = por %p136, %p137
    %p140 = scmp.ne.s32.totalorder %s125, %s139
    %p141 = scmp.eq.s32.totalorder %s17, 0
    %p142 = por %p140, %p141
    %s143 = ssub.s32 %s18, %s30
    %s144 = ssub.s32 %s19, %s26
    %s145 = sor.u32 %s143, %s144
    %p146 = scmp.eq.s32.totalorder %s145, 0
    %s148 = sadd.s32 %s147, 1
    %s149 = scalar_select %p146, %s147, %s148
    %p152 = pneg %p146
    %p153 = scmp.eq.s32.totalorder %s11, 1
    %p154 = por %p152, %p153
    %p155 = scmp.ne.s32.totalorder %s147, %s150
    %p156 = scmp.eq.s32.totalorder %s11, 0
    %p157 = por %p155, %p156
    %p158 = scmp.ne.s32.totalorder %s147, %s150
    %p159 = scmp.eq.s32.totalorder %s16, 1
    %p160 = por %p158, %p159
    %p161 = scmp.ne.s32.totalorder %s150, %s151
    %p162 = scmp.eq.s32.totalorder %s16, 0
    %p163 = por %p161, %p162
    %p164 = scmp.ne.s32.totalorder %s150, %s151
    %p165 = scmp.eq.s32.totalorder %s17, 1
    %p166 = por %p164, %p165
    %p168 = scmp.ne.s32.totalorder %s151, %s167
    %p169 = scmp.eq.s32.totalorder %s17, 0
    %p170 = por %p168, %p169
    %p171 = scmp.le.s32.totalorder 1, %s11
    %p172 = scmp.lt.s32.totalorder %s11, 3
    %p173 = pnand %p171, %p172
    %p174 = pneg %p173
    // Predicated region
    $region9: #{tpu_custom_call.1} parent=5 // pred_check
      _
    $region10: #{tpu_custom_call.1} parent=5 // pred_check_branch
      %176 = sbr.rel (%p173) target = $region12
    $region11: #{tpu_custom_call.1} parent=5 // pred_region
      %s177 = ssub.s32 %s11, 1
      // Predicated region
      $region13: #{tpu_custom_call.1} parent=11 // pred_check
        %p178 = pneg %p72
      $region14: #{tpu_custom_call.1} parent=11 // pred_check_branch
        %180 = sbr.rel (%p178) target = $region16
      $region15: #{tpu_custom_call.1} parent=11 // pred_region
        _
      $region16: #{tpu_custom_call.1} parent=11 // pred_fallthru
        _
      // Predicated region
      $region17: #{tpu_custom_call.1} parent=11 // pred_check
        %p181 = pneg %p93
      $region18: #{tpu_custom_call.1} parent=11 // pred_check_branch
        %183 = sbr.rel (%p181) target = $region20
      $region19: #{tpu_custom_call.1} parent=11 // pred_region
        _
      $region20: #{tpu_custom_call.1} parent=11 // pred_fallthru
        _
      // Predicated region
      $region21: #{tpu_custom_call.1} parent=11 // pred_check
        %p184 = pneg %p114
      $region22: #{tpu_custom_call.1} parent=11 // pred_check_branch
        %186 = sbr.rel (%p184) target = $region24
      $region23: #{tpu_custom_call.1} parent=11 // pred_region
        _
      $region24: #{tpu_custom_call.1} parent=11 // pred_fallthru
        _
      // Predicated region
      $region25: #{tpu_custom_call.1} parent=11 // pred_check
        %p187 = pneg %p135
      $region26: #{tpu_custom_call.1} parent=11 // pred_check_branch
        %189 = sbr.rel (%p187) target = $region28
      $region27: #{tpu_custom_call.1} parent=11 // pred_region
        _
      $region28: #{tpu_custom_call.1} parent=11 // pred_fallthru
        _
    $region12: #{tpu_custom_call.1} parent=5 // pred_fallthru
      _
    %p190 = scmp.lt.s32.totalorder %s11, 2
    // Predicated region
    $region29: #{tpu_custom_call.1} parent=5 // pred_check
      %p191 = pneg %p190
    $region30: #{tpu_custom_call.1} parent=5 // pred_check_branch
      %193 = sbr.rel (%p191) target = $region32
    $region31: #{tpu_custom_call.1} parent=5 // pred_region
      // Predicated region
      $region33: #{tpu_custom_call.1} parent=31 // pred_check
        %p194 = pneg %p45
      $region34: #{tpu_custom_call.1} parent=31 // pred_check_branch
        %196 = sbr.rel (%p194) target = $region36
      $region35: #{tpu_custom_call.1} parent=31 // pred_region
        %p197 = scmp.lt.s32.totalorder %s18, 1
        %s198 = scalar_select %p197, %s18, 1
        %p199 = scmp.lt.s32.totalorder %s19, 0
        %s200 = scalar_select %p199, %s19, 0
        %s201 = smul.addr %s200, 14
        %s202 = smul.addr %s198, 14
        %s203 = sadd.s32 %s201, %s202
        %s204 = smul.addr %s203, 4
        %s205 = scalar_lea.vmem %s0, %s204
      $region36: #{tpu_custom_call.1} parent=31 // pred_fallthru
        _
    $region32: #{tpu_custom_call.1} parent=5 // pred_fallthru
      _
    %p206 = scmp.le.s32.totalorder 1, %s11
    %p207 = scmp.lt.s32.totalorder %s11, 3
    %p208 = pnand %p206, %p207
    %p209 = pneg %p208
    // Predicated region
    $region37: #{tpu_custom_call.1} parent=5 // pred_check
      _
    $region38: #{tpu_custom_call.1} parent=5 // pred_check_branch
      %211 = sbr.rel (%p208) target = $region40
    $region39: #{tpu_custom_call.1} parent=5 // pred_region
      %s212 = ssub.s32 %s11, 1
      %p213 = scmp.lt.s32.totalorder %s20, 1
      %s214 = scalar_select %p213, %s20, 1
      %p215 = scmp.lt.s32.totalorder %s21, 0
      %s216 = scalar_select %p215, %s21, 0
      %s217 = smul.addr %s216, 14
      %s218 = smul.addr %s214, 14
      %s219 = sadd.s32 %s217, %s218
      %s220 = smul.addr %s219, 4
      %s221 = scalar_lea.vmem %s0, %s220
      %p222 = pneg %p51
      %p223 = pneg %p48
      %p224 = pneg %p72
      %p225 = pneg %p69
      %p226 = pneg %p93
      %p227 = pneg %p90
      %p228 = pneg %p114
      %p229 = pneg %p111
      %p230 = pneg %p135
      %p231 = pneg %p132
      %p232 = pneg %p163
      %p233 = pneg %p160
      %s234 = smul.u32 10, %s21
      %p235 = scmp.lt.s32.totalorder %s20, 1
      %s236 = scalar_select %p235, %s20, 1
      %p237 = scmp.lt.s32.totalorder %s234, 9
      %s238 = scalar_select %p237, %s234, 9
      %s239 = smul.addr %s236, 10
      %s240 = sadd.s32 %s238, %s239
      %s241 = smul.addr %s240, 8
      %s242 = scalar_lea.vmem %s5, %s241
      %p243 = scmp.lt.s32.totalorder %s20, 1
      %s244 = scalar_select %p243, %s20, 1
      %p245 = scmp.lt.s32.totalorder %s21, 0
      %s246 = scalar_select %p245, %s21, 0
      %s247 = smul.addr %s246, 14
      %s248 = smul.addr %s244, 14
      %s249 = sadd.s32 %s247, %s248
      %s250 = smul.addr %s249, 4
      %s251 = scalar_lea.vmem %s0, %s250
      %s252 = smul.u32 10, %s21
      %p253 = scmp.lt.s32.totalorder %s20, 1
      %s254 = scalar_select %p253, %s20, 1
      %p255 = scmp.lt.s32.totalorder %s252, 9
      %s256 = scalar_select %p255, %s252, 9
      %s257 = smul.addr %s254, 10
      %s258 = sadd.s32 %s256, %s257
      %s259 = smul.addr %s258, 8
      %s260 = scalar_lea.vmem %s5, %s259
      %s261 = smul.u32 10, %s21
      %v263 = vld [vmem:[%s2] sm:$0x1]
      %v264 = vld [vmem:[%s251] sm:$0xf]
      %v265 = vld [vmem:[%s251 + $0x4] sm:$0xf]
      %v266 = vld [vmem:[%s251 + $0x8] sm:$0xf]
      %v267 = vld [vmem:[%s251 + $0xc] sm:$0xf]
      %v268 = vld [vmem:[%s251 + $0x10] sm:$0xf]
      %v269 = vld [vmem:[%s251 + $0x14] sm:$0xf]
      %v270 = vld [vmem:[%s251 + $0x18] sm:$0xf]
      %v271 = vld [vmem:[%s251 + $0x1c] sm:$0xf]
      %v272 = vld [vmem:[%s251 + $0x20] sm:$0xf]
      %v273 = vld [vmem:[%s251 + $0x24] sm:$0xf]
      %v274 = vld [vmem:[%s1] sm:$0xf]
      %v275 = vld [vmem:[%s1 + $0x4] sm:$0x3]
      %v286 = vunpack.c.l.b16 %v264
      %v287 = vunpack.c.l.b16 %v265
      %v288 = vunpack.c.l.b16 %v266
      %v289 = vunpack.c.l.b16 %v267
      %v290 = vunpack.c.l.b16 %v268
      %v291 = vunpack.c.l.b16 %v269
      %v292 = vunpack.c.l.b16 %v270
      %v293 = vunpack.c.l.b16 %v271
      %v294 = vunpack.c.l.b16 %v272
      %v295 = vunpack.c.l.b16 %v273
      %v296 = vpack.c.b16 %v287, %v286
      %v297 = vpack.c.b16 %v289, %v288
      %v298 = vpack.c.b16 %v291, %v290
      %v299 = vpack.c.b16 %v293, %v292
      %v300 = vpack.c.b16 %v295, %v294
      %v303 = vunpack.c.l.b16 %v274
      %v304 = vunpack.c.l.b16 %v275
      %v305 = vpack.c.b16 %v304, %v303
      %vm306 = vcmask 97280
      %v308 = vsel %vm306, %v296, 0
      %v311 = vsel %vm306, %v297, 0
      %v314 = vsel %vm306, %v298, 0
      %v317 = vsel %vm306, %v299, 0
      %v320 = vsel %vm306, %v300, 0
      %vm322 = vcmask 1045504
      %v324 = vsel %vm322, %v305, 0
      %326 = vmatpush.bf16.msra.mxu0 0
      %327 = vmatpush.bf16.msra.mxu0 0
      %328 = vmatpush.bf16.msra.mxu0 0
      %329 = vmatpush.bf16.msra.mxu0 0
      %330 = vmatpush.bf16.msra.mxu0 0
      %331 = vmatpush.bf16.msra.mxu0 0
      %332 = vmatpush.bf16.msra.mxu0 0
      %333 = vmatpush.bf16.msra.mxu0 %v324
      %334 = vmatmul.bf16.gmra.mxu0 %v308
      %v335 = vpop.f32.mrf.mxu0
      %v336 = vadd.f32 0.0, %v335
      %v337 = vpop.f32.mrf.mxu0
      %v338 = vadd.f32 0.0, %v337
      %339 = vmatmul.bf16.gmra.mxu0 %v311
      %v340 = vpop.f32.mrf.mxu0
      %v341 = vadd.f32 0.0, %v340
      %v342 = vpop.f32.mrf.mxu0
      %v343 = vadd.f32 0.0, %v342
      %344 = vmatmul.bf16.gmra.mxu0 %v314
      %v345 = vpop.f32.mrf.mxu0
      %v346 = vadd.f32 0.0, %v345
      %v347 = vpop.f32.mrf.mxu0
      %v348 = vadd.f32 0.0, %v347
      %349 = vmatmul.bf16.gmra.mxu0 %v317
      %v350 = vpop.f32.mrf.mxu0
      %v351 = vadd.f32 0.0, %v350
      %v352 = vpop.f32.mrf.mxu0
      %v353 = vadd.f32 0.0, %v352
      %354 = vmatmul.bf16.gmra.mxu0 %v320
      %v355 = vpop.f32.mrf.mxu0
      %v356 = vadd.f32 0.0, %v355
      %v357 = vpop.f32.mrf.mxu0
      %v358 = vadd.f32 0.0, %v357
      %359 = vdwg.mxu0
      %vm360 = vcmask 261120
      %361 = vst.msk [vmem:[#allocation2] sm:$0xff] %vm360, %v336
      %362 = vst.msk [vmem:[#allocation2 + $0x8] sm:$0xff] %vm360, %v338
      %363 = vst.msk [vmem:[#allocation2 + $0x10] sm:$0xff] %vm360, %v341
      %364 = vst.msk [vmem:[#allocation2 + $0x18] sm:$0xff] %vm360, %v343
      %365 = vst.msk [vmem:[#allocation2 + $0x20] sm:$0xff] %vm360, %v346
      %366 = vst.msk [vmem:[#allocation2 + $0x28] sm:$0xff] %vm360, %v348
      %367 = vst.msk [vmem:[#allocation2 + $0x30] sm:$0xff] %vm360, %v351
      %368 = vst.msk [vmem:[#allocation2 + $0x38] sm:$0xff] %vm360, %v353
      %369 = vst.msk [vmem:[#allocation2 + $0x40] sm:$0xff] %vm360, %v356
      %370 = vst.msk [vmem:[#allocation2 + $0x48] sm:$0xff] %vm360, %v358
      %v371 = vld [vmem:[%s251] sm:$0xf]
      %v372 = vld [vmem:[%s251 + $0x4] sm:$0xf]
      %v373 = vld [vmem:[%s251 + $0x8] sm:$0xf]
      %v374 = vld [vmem:[%s251 + $0xc] sm:$0xf]
      %v375 = vld [vmem:[%s251 + $0x10] sm:$0xf]
      %v376 = vld [vmem:[%s251 + $0x14] sm:$0xf]
      %v377 = vld [vmem:[%s251 + $0x18] sm:$0xf]
      %v378 = vld [vmem:[%s251 + $0x1c] sm:$0xf]
      %v379 = vld [vmem:[%s251 + $0x20] sm:$0xf]
      %v380 = vld [vmem:[%s251 + $0x24] sm:$0xf]
      %v381 = vld [vmem:[%s251 + $0x28] sm:$0x1]
      %s382 = scalar_lea.vmem %s1, 8
      %v383 = vld [vmem:[%s382] sm:$0xf]
      %v384 = vld [vmem:[%s382 + $0x4] sm:$0x3]
      %v396 = vunpack.c.l.b16 %v371
      %v397 = vunpack.c.l.b16 %v372
      %v398 = vunpack.c.l.b16 %v373
      %v399 = vunpack.c.l.b16 %v374
      %v400 = vunpack.c.l.b16 %v375
      %v401 = vunpack.c.l.b16 %v376
      %v402 = vunpack.c.l.b16 %v377
      %v403 = vunpack.c.l.b16 %v378
      %v404 = vunpack.c.l.b16 %v379
      %v405 = vunpack.c.l.b16 %v380
      %v406 = vunpack.c.l.b16 %v381
      %v407 = vpack.c.b16 %v397, %v396
      %v408 = vpack.c.b16 %v399, %v398
      %v409 = vpack.c.b16 %v401, %v400
      %v410 = vpack.c.b16 %v403, %v402
      %v411 = vpack.c.b16 %v405, %v404
      %v412 = vpack.c.b16 %v406, %v406
      %vm413 = vsmask.f32 7424
      %v415 = vshrl.u32 %v407, 16
      %v417 = vshll.u32 %v407, 16
      %v419 = vrot.slane %v417, 1
      %v420 = vor.u32 %v415, %v419
      %v422 = vshll.u32 %v408, 16
      %v424 = vrot.slane %v422, 1
      %v425 = vsel %vm413, %v420, %v424
      %v426 = vshrl.u32 %v408, 16
      %v428 = vor.u32 %v426, %v424
      %v430 = vshll.u32 %v409, 16
      %v432 = vrot.slane %v430, 1
      %v433 = vsel %vm413, %v428, %v432
      %v434 = vshrl.u32 %v409, 16
      %v436 = vor.u32 %v434, %v432
      %v438 = vshll.u32 %v410, 16
      %v440 = vrot.slane %v438, 1
      %v441 = vsel %vm413, %v436, %v440
      %v442 = vshrl.u32 %v410, 16
      %v444 = vor.u32 %v442, %v440
      %v446 = vshll.u32 %v411, 16
      %v448 = vrot.slane %v446, 1
      %v449 = vsel %vm413, %v444, %v448
      %v450 = vshrl.u32 %v411, 16
      %v452 = vor.u32 %v450, %v448
      %v454 = vshll.u32 %v412, 16
      %v456 = vrot.slane %v454, 1
      %v457 = vsel %vm413, %v452, %v456
      %v460 = vunpack.c.l.b16 %v383
      %v461 = vunpack.c.l.b16 %v384
      %v462 = vpack.c.b16 %v461, %v460
      %v464 = vsel %vm306, %v425, 0
      %v467 = vsel %vm306, %v433, 0
      %v470 = vsel %vm306, %v441, 0
      %v473 = vsel %vm306, %v449, 0
      %v476 = vsel %vm306, %v457, 0
      %v479 = vsel %vm322, %v462, 0
      %481 = vmatpush.bf16.msra.mxu0 0
      %482 = vmatpush.bf16.msra.mxu0 0
      %483 = vmatpush.bf16.msra.mxu0 0
      %484 = vmatpush.bf16.msra.mxu0 0
      %485 = vmatpush.bf16.msra.mxu0 0
      %486 = vmatpush.bf16.msra.mxu0 0
      %487 = vmatpush.bf16.msra.mxu0 0
      %488 = vmatpush.bf16.msra.mxu0 %v479
      %489 = vmatmul.bf16.gmra.mxu0 %v464
      %v490 = vpop.f32.mrf.mxu0
      %v491 = vadd.f32 0.0, %v490
      %v492 = vpop.f32.mrf.mxu0
      %v493 = vadd.f32 0.0, %v492
      %494 = vmatmul.bf16.gmra.mxu0 %v467
      %v495 = vpop.f32.mrf.mxu0
      %v496 = vadd.f32 0.0, %v495
      %v497 = vpop.f32.mrf.mxu0
      %v498 = vadd.f32 0.0, %v497
      %499 = vmatmul.bf16.gmra.mxu0 %v470
      %v500 = vpop.f32.mrf.mxu0
      %v501 = vadd.f32 0.0, %v500
      %v502 = vpop.f32.mrf.mxu0
      %v503 = vadd.f32 0.0, %v502
      %504 = vmatmul.bf16.gmra.mxu0 %v473
      %v505 = vpop.f32.mrf.mxu0
      %v506 = vadd.f32 0.0, %v505
      %v507 = vpop.f32.mrf.mxu0
      %v508 = vadd.f32 0.0, %v507
      %509 = vmatmul.bf16.gmra.mxu0 %v476
      %v510 = vpop.f32.mrf.mxu0
      %v511 = vadd.f32 0.0, %v510
      %v512 = vpop.f32.mrf.mxu0
      %v513 = vadd.f32 0.0, %v512
      %514 = vdwg.mxu0
      %v515 = vld [vmem:[#allocation2] sm:$0xff]
      %v516 = vld [vmem:[#allocation2 + $0x8] sm:$0xff]
      %v517 = vld [vmem:[#allocation2 + $0x10] sm:$0xff]
      %v518 = vld [vmem:[#allocation2 + $0x18] sm:$0xff]
      %v519 = vld [vmem:[#allocation2 + $0x20] sm:$0xff]
      %v520 = vld [vmem:[#allocation2 + $0x28] sm:$0xff]
      %v521 = vld [vmem:[#allocation2 + $0x30] sm:$0xff]
      %v522 = vld [vmem:[#allocation2 + $0x38] sm:$0xff]
      %v523 = vld [vmem:[#allocation2 + $0x40] sm:$0xff]
      %v524 = vld [vmem:[#allocation2 + $0x48] sm:$0xff]
      %v525 = vadd.f32 %v515, %v491
      %v526 = vadd.f32 %v516, %v493
      %v527 = vadd.f32 %v517, %v496
      %v528 = vadd.f32 %v518, %v498
      %v529 = vadd.f32 %v519, %v501
      %v530 = vadd.f32 %v520, %v503
      %v531 = vadd.f32 %v521, %v506
      %v532 = vadd.f32 %v522, %v508
      %v533 = vadd.f32 %v523, %v511
      %v534 = vadd.f32 %v524, %v513
      %535 = vst.msk [vmem:[#allocation2] sm:$0xff] %vm360, %v525
      %536 = vst.msk [vmem:[#allocation2 + $0x8] sm:$0xff] %vm360, %v526
      %537 = vst.msk [vmem:[#allocation2 + $0x10] sm:$0xff] %vm360, %v527
      %538 = vst.msk [vmem:[#allocation2 + $0x18] sm:$0xff] %vm360, %v528
      %539 = vst.msk [vmem:[#allocation2 + $0x20] sm:$0xff] %vm360, %v529
      %540 = vst.msk [vmem:[#allocation2 + $0x28] sm:$0xff] %vm360, %v530
      %541 = vst.msk [vmem:[#allocation2 + $0x30] sm:$0xff] %vm360, %v531
      %542 = vst.msk [vmem:[#allocation2 + $0x38] sm:$0xff] %vm360, %v532
      %543 = vst.msk [vmem:[#allocation2 + $0x40] sm:$0xff] %vm360, %v533
      %544 = vst.msk [vmem:[#allocation2 + $0x48] sm:$0xff] %vm360, %v534
      %v545 = vld [vmem:[%s251] sm:$0xe]
      %v546 = vld [vmem:[%s251 + $0x4] sm:$0xf]
      %v547 = vld [vmem:[%s251 + $0x8] sm:$0xf]
      %v548 = vld [vmem:[%s251 + $0xc] sm:$0xf]
      %v549 = vld [vmem:[%s251 + $0x10] sm:$0xf]
      %v550 = vld [vmem:[%s251 + $0x14] sm:$0xf]
      %v551 = vld [vmem:[%s251 + $0x18] sm:$0xf]
      %v552 = vld [vmem:[%s251 + $0x1c] sm:$0xf]
      %v553 = vld [vmem:[%s251 + $0x20] sm:$0xf]
      %v554 = vld [vmem:[%s251 + $0x24] sm:$0xf]
      %v555 = vld [vmem:[%s251 + $0x28] sm:$0x1]
      %s556 = scalar_lea.vmem %s1, 16
      %v557 = vld [vmem:[%s556] sm:$0xf]
      %v558 = vld [vmem:[%s556 + $0x4] sm:$0x3]
      %v570 = vunpack.c.l.b16 %v545
      %v571 = vunpack.c.l.b16 %v546
      %v572 = vunpack.c.l.b16 %v547
      %v573 = vunpack.c.l.b16 %v548
      %v574 = vunpack.c.l.b16 %v549
      %v575 = vunpack.c.l.b16 %v550
      %v576 = vunpack.c.l.b16 %v551
      %v577 = vunpack.c.l.b16 %v552
      %v578 = vunpack.c.l.b16 %v553
      %v579 = vunpack.c.l.b16 %v554
      %v580 = vunpack.c.l.b16 %v555
      %v581 = vpack.c.b16 %v571, %v570
      %v582 = vpack.c.b16 %v573, %v572
      %v583 = vpack.c.b16 %v575, %v574
      %v584 = vpack.c.b16 %v577, %v576
      %v585 = vpack.c.b16 %v579, %v578
      %v586 = vpack.c.b16 %v580, %v580
      %vm587 = vcmask 1046528
      %v588 = vrot.slane %v581, 1
      %v589 = vrot.slane %v582, 1
      %v590 = vsel %vm587, %v588, %v589
      %v591 = vrot.slane %v583, 1
      %v592 = vsel %vm587, %v589, %v591
      %v593 = vrot.slane %v584, 1
      %v594 = vsel %vm587, %v591, %v593
      %v595 = vrot.slane %v585, 1
      %v596 = vsel %vm587, %v593, %v595
      %v597 = vrot.slane %v586, 1
      %v598 = vsel %vm587, %v595, %v597
      %v601 = vunpack.c.l.b16 %v557
      %v602 = vunpack.c.l.b16 %v558
      %v603 = vpack.c.b16 %v602, %v601
      %v605 = vsel %vm306, %v590, 0
      %v608 = vsel %vm306, %v592, 0
      %v611 = vsel %vm306, %v594, 0
      %v614 = vsel %vm306, %v596, 0
      %v617 = vsel %vm306, %v598, 0
      %v620 = vsel %vm322, %v603, 0
      %622 = vmatpush.bf16.msra.mxu0 0
      %623 = vmatpush.bf16.msra.mxu0 0
      %624 = vmatpush.bf16.msra.mxu0 0
      %625 = vmatpush.bf16.msra.mxu0 0
      %626 = vmatpush.bf16.msra.mxu0 0
      %627 = vmatpush.bf16.msra.mxu0 0
      %628 = vmatpush.bf16.msra.mxu0 0
      %629 = vmatpush.bf16.msra.mxu0 %v620
      %630 = vmatmul.bf16.gmra.mxu0 %v605
      %v631 = vpop.f32.mrf.mxu0
      %v632 = vadd.f32 0.0, %v631
      %v633 = vpop.f32.mrf.mxu0
      %v634 = vadd.f32 0.0, %v633
      %635 = vmatmul.bf16.gmra.mxu0 %v608
      %v636 = vpop.f32.mrf.mxu0
      %v637 = vadd.f32 0.0, %v636
      %v638 = vpop.f32.mrf.mxu0
      %v639 = vadd.f32 0.0, %v638
      %640 = vmatmul.bf16.gmra.mxu0 %v611
      %v641 = vpop.f32.mrf.mxu0
      %v642 = vadd.f32 0.0, %v641
      %v643 = vpop.f32.mrf.mxu0
      %v644 = vadd.f32 0.0, %v643
      %645 = vmatmul.bf16.gmra.mxu0 %v614
      %v646 = vpop.f32.mrf.mxu0
      %v647 = vadd.f32 0.0, %v646
      %v648 = vpop.f32.mrf.mxu0
      %v649 = vadd.f32 0.0, %v648
      %650 = vmatmul.bf16.gmra.mxu0 %v617
      %v651 = vpop.f32.mrf.mxu0
      %v652 = vadd.f32 0.0, %v651
      %v653 = vpop.f32.mrf.mxu0
      %v654 = vadd.f32 0.0, %v653
      %655 = vdwg.mxu0
      %v656 = vld [vmem:[#allocation2] sm:$0xff]
      %v657 = vld [vmem:[#allocation2 + $0x8] sm:$0xff]
      %v658 = vld [vmem:[#allocation2 + $0x10] sm:$0xff]
      %v659 = vld [vmem:[#allocation2 + $0x18] sm:$0xff]
      %v660 = vld [vmem:[#allocation2 + $0x20] sm:$0xff]
      %v661 = vld [vmem:[#allocation2 + $0x28] sm:$0xff]
      %v662 = vld [vmem:[#allocation2 + $0x30] sm:$0xff]
      %v663 = vld [vmem:[#allocation2 + $0x38] sm:$0xff]
      %v664 = vld [vmem:[#allocation2 + $0x40] sm:$0xff]
      %v665 = vld [vmem:[#allocation2 + $0x48] sm:$0xff]
      %v666 = vadd.f32 %v656, %v632
      %v667 = vadd.f32 %v657, %v634
      %v668 = vadd.f32 %v658, %v637
      %v669 = vadd.f32 %v659, %v639
      %v670 = vadd.f32 %v660, %v642
      %v671 = vadd.f32 %v661, %v644
      %v672 = vadd.f32 %v662, %v647
      %v673 = vadd.f32 %v663, %v649
      %v674 = vadd.f32 %v664, %v652
      %v675 = vadd.f32 %v665, %v654
      %676 = vst.msk [vmem:[#allocation2] sm:$0xff] %vm360, %v666
      %677 = vst.msk [vmem:[#allocation2 + $0x8] sm:$0xff] %vm360, %v667
      %678 = vst.msk [vmem:[#allocation2 + $0x10] sm:$0xff] %vm360, %v668
      %679 = vst.msk [vmem:[#allocation2 + $0x18] sm:$0xff] %vm360, %v669
      %680 = vst.msk [vmem:[#allocation2 + $0x20] sm:$0xff] %vm360, %v670
      %681 = vst.msk [vmem:[#allocation2 + $0x28] sm:$0xff] %vm360, %v671
      %682 = vst.msk [vmem:[#allocation2 + $0x30] sm:$0xff] %vm360, %v672
      %683 = vst.msk [vmem:[#allocation2 + $0x38] sm:$0xff] %vm360, %v673
      %684 = vst.msk [vmem:[#allocation2 + $0x40] sm:$0xff] %vm360, %v674
      %685 = vst.msk [vmem:[#allocation2 + $0x48] sm:$0xff] %vm360, %v675
      %v686 = vld [vmem:[%s251 + $0x4] sm:$0xe]
      %v687 = vld [vmem:[%s251 + $0x8] sm:$0xf]
      %v688 = vld [vmem:[%s251 + $0xc] sm:$0xf]
      %v689 = vld [vmem:[%s251 + $0x10] sm:$0xf]
      %v690 = vld [vmem:[%s251 + $0x14] sm:$0xf]
      %v691 = vld [vmem:[%s251 + $0x18] sm:$0xf]
      %v692 = vld [vmem:[%s251 + $0x1c] sm:$0xf]
      %v693 = vld [vmem:[%s251 + $0x20] sm:$0xf]
      %v694 = vld [vmem:[%s251 + $0x24] sm:$0xf]
      %v695 = vld [vmem:[%s251 + $0x28] sm:$0xf]
      %v696 = vld [vmem:[%s251 + $0x2c] sm:$0x1]
      %s697 = scalar_lea.vmem %s1, 24
      %v698 = vld [vmem:[%s697] sm:$0xf]
      %v699 = vld [vmem:[%s697 + $0x4] sm:$0x3]
      %v711 = vunpack.c.l.b16 %v686
      %v712 = vunpack.c.l.b16 %v687
      %v713 = vunpack.c.l.b16 %v688
      %v714 = vunpack.c.l.b16 %v689
      %v715 = vunpack.c.l.b16 %v690
      %v716 = vunpack.c.l.b16 %v691
      %v717 = vunpack.c.l.b16 %v692
      %v718 = vunpack.c.l.b16 %v693
      %v719 = vunpack.c.l.b16 %v694
      %v720 = vunpack.c.l.b16 %v695
      %v721 = vunpack.c.l.b16 %v696
      %v722 = vpack.c.b16 %v712, %v711
      %v723 = vpack.c.b16 %v714, %v713
      %v724 = vpack.c.b16 %v716, %v715
      %v725 = vpack.c.b16 %v718, %v717
      %v726 = vpack.c.b16 %v720, %v719
      %v727 = vpack.c.b16 %v721, %v721
      %v728 = vrot.slane %v722, 1
      %v729 = vrot.slane %v723, 1
      %v730 = vsel %vm587, %v728, %v729
      %v731 = vrot.slane %v724, 1
      %v732 = vsel %vm587, %v729, %v731
      %v733 = vrot.slane %v725, 1
      %v734 = vsel %vm587, %v731, %v733
      %v735 = vrot.slane %v726, 1
      %v736 = vsel %vm587, %v733, %v735
      %v737 = vrot.slane %v727, 1
      %v738 = vsel %vm587, %v735, %v737
      %v741 = vunpack.c.l.b16 %v698
      %v742 = vunpack.c.l.b16 %v699
      %v743 = vpack.c.b16 %v742, %v741
      %v745 = vsel %vm306, %v730, 0
      %v748 = vsel %vm306, %v732, 0
      %v751 = vsel %vm306, %v734, 0
      %v754 = vsel %vm306, %v736, 0
      %v757 = vsel %vm306, %v738, 0
      %v760 = vsel %vm322, %v743, 0
      %762 = vmatpush.bf16.msra.mxu0 0
      %763 = vmatpush.bf16.msra.mxu0 0
      %764 = vmatpush.bf16.msra.mxu0 0
      %765 = vmatpush.bf16.msra.mxu0 0
      %766 = vmatpush.bf16.msra.mxu0 0
      %767 = vmatpush.bf16.msra.mxu0 0
      %768 = vmatpush.bf16.msra.mxu0 0
      %769 = vmatpush.bf16.msra.mxu0 %v760
      %770 = vmatmul.bf16.gmra.mxu0 %v745
      %v771 = vpop.f32.mrf.mxu0
      %v772 = vadd.f32 0.0, %v771
      %v773 = vpop.f32.mrf.mxu0
      %v774 = vadd.f32 0.0, %v773
      %775 = vmatmul.bf16.gmra.mxu0 %v748
      %v776 = vpop.f32.mrf.mxu0
      %v777 = vadd.f32 0.0, %v776
      %v778 = vpop.f32.mrf.mxu0
      %v779 = vadd.f32 0.0, %v778
      %780 = vmatmul.bf16.gmra.mxu0 %v751
      %v781 = vpop.f32.mrf.mxu0
      %v782 = vadd.f32 0.0, %v781
      %v783 = vpop.f32.mrf.mxu0
      %v784 = vadd.f32 0.0, %v783
      %785 = vmatmul.bf16.gmra.mxu0 %v754
      %v786 = vpop.f32.mrf.mxu0
      %v787 = vadd.f32 0.0, %v786
      %v788 = vpop.f32.mrf.mxu0
      %v789 = vadd.f32 0.0, %v788
      %790 = vmatmul.bf16.gmra.mxu0 %v757
      %v791 = vpop.f32.mrf.mxu0
      %v792 = vadd.f32 0.0, %v791
      %v793 = vpop.f32.mrf.mxu0
      %v794 = vadd.f32 0.0, %v793
      %795 = vdwg.mxu0
      %v796 = vld [vmem:[#allocation2] sm:$0xff]
      %v797 = vld [vmem:[#allocation2 + $0x8] sm:$0xff]
      %v798 = vld [vmem:[#allocation2 + $0x10] sm:$0xff]
      %v799 = vld [vmem:[#allocation2 + $0x18] sm:$0xff]
      %v800 = vld [vmem:[#allocation2 + $0x20] sm:$0xff]
      %v801 = vld [vmem:[#allocation2 + $0x28] sm:$0xff]
      %v802 = vld [vmem:[#allocation2 + $0x30] sm:$0xff]
      %v803 = vld [vmem:[#allocation2 + $0x38] sm:$0xff]
      %v804 = vld [vmem:[#allocation2 + $0x40] sm:$0xff]
      %v805 = vld [vmem:[#allocation2 + $0x48] sm:$0xff]
      %v806 = vadd.f32 %v796, %v772
      %v807 = vadd.f32 %v797, %v774
      %v808 = vadd.f32 %v798, %v777
      %v809 = vadd.f32 %v799, %v779
      %v810 = vadd.f32 %v800, %v782
      %v811 = vadd.f32 %v801, %v784
      %v812 = vadd.f32 %v802, %v787
      %v813 = vadd.f32 %v803, %v789
      %v814 = vadd.f32 %v804, %v792
      %v815 = vadd.f32 %v805, %v794
      %816 = vst.msk [vmem:[#allocation2] sm:$0xff] %vm360, %v806
      %817 = vst.msk [vmem:[#allocation2 + $0x8] sm:$0xff] %vm360, %v807
      %818 = vst.msk [vmem:[#allocation2 + $0x10] sm:$0xff] %vm360, %v808
      %819 = vst.msk [vmem:[#allocation2 + $0x18] sm:$0xff] %vm360, %v809
      %820 = vst.msk [vmem:[#allocation2 + $0x20] sm:$0xff] %vm360, %v810
      %821 = vst.msk [vmem:[#allocation2 + $0x28] sm:$0xff] %vm360, %v811
      %822 = vst.msk [vmem:[#allocation2 + $0x30] sm:$0xff] %vm360, %v812
      %823 = vst.msk [vmem:[#allocation2 + $0x38] sm:$0xff] %vm360, %v813
      %824 = vst.msk [vmem:[#allocation2 + $0x40] sm:$0xff] %vm360, %v814
      %825 = vst.msk [vmem:[#allocation2 + $0x48] sm:$0xff] %vm360, %v815
      %v826 = vld [vmem:[%s251 + $0x4] sm:$0xe]
      %v827 = vld [vmem:[%s251 + $0x8] sm:$0xf]
      %v828 = vld [vmem:[%s251 + $0xc] sm:$0xf]
      %v829 = vld [vmem:[%s251 + $0x10] sm:$0xf]
      %v830 = vld [vmem:[%s251 + $0x14] sm:$0xf]
      %v831 = vld [vmem:[%s251 + $0x18] sm:$0xf]
      %v832 = vld [vmem:[%s251 + $0x1c] sm:$0xf]
      %v833 = vld [vmem:[%s251 + $0x20] sm:$0xf]
      %v834 = vld [vmem:[%s251 + $0x24] sm:$0xf]
      %v835 = vld [vmem:[%s251 + $0x28] sm:$0xf]
      %v836 = vld [vmem:[%s251 + $0x2c] sm:$0x3]
      %s837 = scalar_lea.vmem %s1, 32
      %v838 = vld [vmem:[%s837] sm:$0xf]
      %v839 = vld [vmem:[%s837 + $0x4] sm:$0x3]
      %v851 = vunpack.c.l.b16 %v826
      %v852 = vunpack.c.l.b16 %v827
      %v853 = vunpack.c.l.b16 %v828
      %v854 = vunpack.c.l.b16 %v829
      %v855 = vunpack.c.l.b16 %v830
      %v856 = vunpack.c.l.b16 %v831
      %v857 = vunpack.c.l.b16 %v832
      %v858 = vunpack.c.l.b16 %v833
      %v859 = vunpack.c.l.b16 %v834
      %v860 = vunpack.c.l.b16 %v835
      %v861 = vunpack.c.l.b16 %v836
      %v862 = vpack.c.b16 %v852, %v851
      %v863 = vpack.c.b16 %v854, %v853
      %v864 = vpack.c.b16 %v856, %v855
      %v865 = vpack.c.b16 %v858, %v857
      %v866 = vpack.c.b16 %v860, %v859
      %v867 = vpack.c.b16 %v861, %v861
      %vm868 = vsmask.f32 6400
      %v870 = vshrl.u32 %v862, 16
      %v872 = vrot.slane %v870, 1
      %v873 = vshll.u32 %v862, 16
      %v875 = vrot.slane %v873, 2
      %v876 = vor.u32 %v872, %v875
      %v878 = vshrl.u32 %v863, 16
      %v880 = vrot.slane %v878, 1
      %v881 = vshll.u32 %v863, 16
      %v883 = vrot.slane %v881, 2
      %v884 = vor.u32 %v880, %v883
      %v885 = vsel %vm868, %v876, %v884
      %v887 = vshrl.u32 %v864, 16
      %v889 = vrot.slane %v887, 1
      %v890 = vshll.u32 %v864, 16
      %v892 = vrot.slane %v890, 2
      %v893 = vor.u32 %v889, %v892
      %v894 = vsel %vm868, %v884, %v893
      %v896 = vshrl.u32 %v865, 16
      %v898 = vrot.slane %v896, 1
      %v899 = vshll.u32 %v865, 16
      %v901 = vrot.slane %v899, 2
      %v902 = vor.u32 %v898, %v901
      %v903 = vsel %vm868, %v893, %v902
      %v905 = vshrl.u32 %v866, 16
      %v907 = vrot.slane %v905, 1
      %v908 = vshll.u32 %v866, 16
      %v910 = vrot.slane %v908, 2
      %v911 = vor.u32 %v907, %v910
      %v912 = vsel %vm868, %v902, %v911
      %v914 = vshrl.u32 %v867, 16
      %v916 = vrot.slane %v914, 1
      %v917 = vshll.u32 %v867, 16
      %v919 = vrot.slane %v917, 2
      %v920 = vor.u32 %v916, %v919
      %v921 = vsel %vm868, %v911, %v920
      %v924 = vunpack.c.l.b16 %v838
      %v925 = vunpack.c.l.b16 %v839
      %v926 = vpack.c.b16 %v925, %v924
      %v928 = vsel %vm306, %v885, 0
      %v931 = vsel %vm306, %v894, 0
      %v934 = vsel %vm306, %v903, 0
      %v937 = vsel %vm306, %v912, 0
      %v940 = vsel %vm306, %v921, 0
      %v943 = vsel %vm322, %v926, 0
      %945 = vmatpush.bf16.msra.mxu0 0
      %946 = vmatpush.bf16.msra.mxu0 0
      %947 = vmatpush.bf16.msra.mxu0 0
      %948 = vmatpush.bf16.msra.mxu0 0
      %949 = vmatpush.bf16.msra.mxu0 0
      %950 = vmatpush.bf16.msra.mxu0 0
      %951 = vmatpush.bf16.msra.mxu0 0
      %952 = vmatpush.bf16.msra.mxu0 %v943
      %953 = vmatmul.bf16.gmra.mxu0 %v928
      %v954 = vpop.f32.mrf.mxu0
      %v955 = vadd.f32 0.0, %v954
      %v956 = vpop.f32.mrf.mxu0
      %v957 = vadd.f32 0.0, %v956
      %958 = vmatmul.bf16.gmra.mxu0 %v931
      %v959 = vpop.f32.mrf.mxu0
      %v960 = vadd.f32 0.0, %v959
      %v961 = vpop.f32.mrf.mxu0
      %v962 = vadd.f32 0.0, %v961
      %963 = vmatmul.bf16.gmra.mxu0 %v934
      %v964 = vpop.f32.mrf.mxu0
      %v965 = vadd.f32 0.0, %v964
      %v966 = vpop.f32.mrf.mxu0
      %v967 = vadd.f32 0.0, %v966
      %968 = vmatmul.bf16.gmra.mxu0 %v937
      %v969 = vpop.f32.mrf.mxu0
      %v970 = vadd.f32 0.0, %v969
      %v971 = vpop.f32.mrf.mxu0
      %v972 = vadd.f32 0.0, %v971
      %973 = vmatmul.bf16.gmra.mxu0 %v940
      %v974 = vpop.f32.mrf.mxu0
      %v975 = vadd.f32 0.0, %v974
      %v976 = vpop.f32.mrf.mxu0
      %v977 = vadd.f32 0.0, %v976
      %978 = vdwg.mxu0
      %v979 = vld [vmem:[#allocation2] sm:$0xff]
      %v980 = vld [vmem:[#allocation2 + $0x8] sm:$0xff]
      %v981 = vld [vmem:[#allocation2 + $0x10] sm:$0xff]
      %v982 = vld [vmem:[#allocation2 + $0x18] sm:$0xff]
      %v983 = vld [vmem:[#allocation2 + $0x20] sm:$0xff]
      %v984 = vld [vmem:[#allocation2 + $0x28] sm:$0xff]
      %v985 = vld [vmem:[#allocation2 + $0x30] sm:$0xff]
      %v986 = vld [vmem:[#allocation2 + $0x38] sm:$0xff]
      %v987 = vld [vmem:[#allocation2 + $0x40] sm:$0xff]
      %v988 = vld [vmem:[#allocation2 + $0x48] sm:$0xff]
      %v989 = vadd.f32 %v979, %v955
      %v990 = vadd.f32 %v980, %v957
      %v991 = vadd.f32 %v981, %v960
      %v992 = vadd.f32 %v982, %v962
      %v993 = vadd.f32 %v983, %v965
      %v994 = vadd.f32 %v984, %v967
      %v995 = vadd.f32 %v985, %v970
      %v996 = vadd.f32 %v986, %v972
      %v997 = vadd.f32 %v987, %v975
      %v998 = vadd.f32 %v988, %v977
      %999 = vst.msk [vmem:[#allocation2] sm:$0xff] %vm360, %v989
      %1000 = vst.msk [vmem:[#allocation2 + $0x8] sm:$0xff] %vm360, %v990
      %1001 = vst.msk [vmem:[#allocation2 + $0x10] sm:$0xff] %vm360, %v991
      %1002 = vst.msk [vmem:[#allocation2 + $0x18] sm:$0xff] %vm360, %v992
      %1003 = vst.msk [vmem:[#allocation2 + $0x20] sm:$0xff] %vm360, %v993
      %1004 = vst.msk [vmem:[#allocation2 + $0x28] sm:$0xff] %vm360, %v994
      %1005 = vst.msk [vmem:[#allocation2 + $0x30] sm:$0xff] %vm360, %v995
      %1006 = vst.msk [vmem:[#allocation2 + $0x38] sm:$0xff] %vm360, %v996
      %1007 = vst.msk [vmem:[#allocation2 + $0x40] sm:$0xff] %vm360, %v997
      %1008 = vst.msk [vmem:[#allocation2 + $0x48] sm:$0xff] %vm360, %v998
      %v1009 = vld [vmem:[%s251 + $0x4] sm:$0xc]
      %v1010 = vld [vmem:[%s251 + $0x8] sm:$0xf]
      %v1011 = vld [vmem:[%s251 + $0xc] sm:$0xf]
      %v1012 = vld [vmem:[%s251 + $0x10] sm:$0xf]
      %v1013 = vld [vmem:[%s251 + $0x14] sm:$0xf]
      %v1014 = vld [vmem:[%s251 + $0x18] sm:$0xf]
      %v1015 = vld [vmem:[%s251 + $0x1c] sm:$0xf]
      %v1016 = vld [vmem:[%s251 + $0x20] sm:$0xf]
      %v1017 = vld [vmem:[%s251 + $0x24] sm:$0xf]
      %v1018 = vld [vmem:[%s251 + $0x28] sm:$0xf]
      %v1019 = vld [vmem:[%s251 + $0x2c] sm:$0x3]
      %s1020 = scalar_lea.vmem %s1, 40
      %v1021 = vld [vmem:[%s1020] sm:$0xf]
      %v1022 = vld [vmem:[%s1020 + $0x4] sm:$0x3]
      %v1034 = vunpack.c.l.b16 %v1009
      %v1035 = vunpack.c.l.b16 %v1010
      %v1036 = vunpack.c.l.b16 %v1011
      %v1037 = vunpack.c.l.b16 %v1012
      %v1038 = vunpack.c.l.b16 %v1013
      %v1039 = vunpack.c.l.b16 %v1014
      %v1040 = vunpack.c.l.b16 %v1015
      %v1041 = vunpack.c.l.b16 %v1016
      %v1042 = vunpack.c.l.b16 %v1017
      %v1043 = vunpack.c.l.b16 %v1018
      %v1044 = vunpack.c.l.b16 %v1019
      %v1045 = vpack.c.b16 %v1035, %v1034
      %v1046 = vpack.c.b16 %v1037, %v1036
      %v1047 = vpack.c.b16 %v1039, %v1038
      %v1048 = vpack.c.b16 %v1041, %v1040
      %v1049 = vpack.c.b16 %v1043, %v1042
      %v1050 = vpack.c.b16 %v1044, %v1044
      %vm1051 = vcmask 1045504
      %v1052 = vrot.slane %v1045, 2
      %v1053 = vrot.slane %v1046, 2
      %v1054 = vsel %vm1051, %v1052, %v1053
      %v1055 = vrot.slane %v1047, 2
      %v1056 = vsel %vm1051, %v1053, %v1055
      %v1057 = vrot.slane %v1048, 2
      %v1058 = vsel %vm1051, %v1055, %v1057
      %v1059 = vrot.slane %v1049, 2
      %v1060 = vsel %vm1051, %v1057, %v1059
      %v1061 = vrot.slane %v1050, 2
      %v1062 = vsel %vm1051, %v1059, %v1061
      %v1065 = vunpack.c.l.b16 %v1021
      %v1066 = vunpack.c.l.b16 %v1022
      %v1067 = vpack.c.b16 %v1066, %v1065
      %v1069 = vsel %vm306, %v1054, 0
      %v1072 = vsel %vm306, %v1056, 0
      %v1075 = vsel %vm306, %v1058, 0
      %v1078 = vsel %vm306, %v1060, 0
      %v1081 = vsel %vm306, %v1062, 0
      %v1084 = vsel %vm322, %v1067, 0
      %1086 = vmatpush.bf16.msra.mxu0 0
      %1087 = vmatpush.bf16.msra.mxu0 0
      %1088 = vmatpush.bf16.msra.mxu0 0
      %1089 = vmatpush.bf16.msra.mxu0 0
      %1090 = vmatpush.bf16.msra.mxu0 0
      %1091 = vmatpush.bf16.msra.mxu0 0
      %1092 = vmatpush.bf16.msra.mxu0 0
      %1093 = vmatpush.bf16.msra.mxu0 %v1084
      %1094 = vmatmul.bf16.gmra.mxu0 %v1069
      %v1095 = vpop.f32.mrf.mxu0
      %v1096 = vadd.f32 0.0, %v1095
      %v1097 = vpop.f32.mrf.mxu0
      %v1098 = vadd.f32 0.0, %v1097
      %1099 = vmatmul.bf16.gmra.mxu0 %v1072
      %v1100 = vpop.f32.mrf.mxu0
      %v1101 = vadd.f32 0.0, %v1100
      %v1102 = vpop.f32.mrf.mxu0
      %v1103 = vadd.f32 0.0, %v1102
      %1104 = vmatmul.bf16.gmra.mxu0 %v1075
      %v1105 = vpop.f32.mrf.mxu0
      %v1106 = vadd.f32 0.0, %v1105
      %v1107 = vpop.f32.mrf.mxu0
      %v1108 = vadd.f32 0.0, %v1107
      %1109 = vmatmul.bf16.gmra.mxu0 %v1078
      %v1110 = vpop.f32.mrf.mxu0
      %v1111 = vadd.f32 0.0, %v1110
      %v1112 = vpop.f32.mrf.mxu0
      %v1113 = vadd.f32 0.0, %v1112
      %1114 = vmatmul.bf16.gmra.mxu0 %v1081
      %v1115 = vpop.f32.mrf.mxu0
      %v1116 = vadd.f32 0.0, %v1115
      %v1117 = vpop.f32.mrf.mxu0
      %v1118 = vadd.f32 0.0, %v1117
      %1119 = vdwg.mxu0
      %v1120 = vld [vmem:[#allocation2] sm:$0xff]
      %v1121 = vld [vmem:[#allocation2 + $0x8] sm:$0xff]
      %v1122 = vld [vmem:[#allocation2 + $0x10] sm:$0xff]
      %v1123 = vld [vmem:[#allocation2 + $0x18] sm:$0xff]
      %v1124 = vld [vmem:[#allocation2 + $0x20] sm:$0xff]
      %v1125 = vld [vmem:[#allocation2 + $0x28] sm:$0xff]
      %v1126 = vld [vmem:[#allocation2 + $0x30] sm:$0xff]
      %v1127 = vld [vmem:[#allocation2 + $0x38] sm:$0xff]
      %v1128 = vld [vmem:[#allocation2 + $0x40] sm:$0xff]
      %v1129 = vld [vmem:[#allocation2 + $0x48] sm:$0xff]
      %v1130 = vadd.f32 %v1120, %v1096
      %v1131 = vadd.f32 %v1121, %v1098
      %v1132 = vadd.f32 %v1122, %v1101
      %v1133 = vadd.f32 %v1123, %v1103
      %v1134 = vadd.f32 %v1124, %v1106
      %v1135 = vadd.f32 %v1125, %v1108
      %v1136 = vadd.f32 %v1126, %v1111
      %v1137 = vadd.f32 %v1127, %v1113
      %v1138 = vadd.f32 %v1128, %v1116
      %v1139 = vadd.f32 %v1129, %v1118
      %1140 = vst.msk [vmem:[#allocation2] sm:$0xff] %vm360, %v1130
      %1141 = vst.msk [vmem:[#allocation2 + $0x8] sm:$0xff] %vm360, %v1131
      %1142 = vst.msk [vmem:[#allocation2 + $0x10] sm:$0xff] %vm360, %v1132
      %1143 = vst.msk [vmem:[#allocation2 + $0x18] sm:$0xff] %vm360, %v1133
      %1144 = vst.msk [vmem:[#allocation2 + $0x20] sm:$0xff] %vm360, %v1134
      %1145 = vst.msk [vmem:[#allocation2 + $0x28] sm:$0xff] %vm360, %v1135
      %1146 = vst.msk [vmem:[#allocation2 + $0x30] sm:$0xff] %vm360, %v1136
      %1147 = vst.msk [vmem:[#allocation2 + $0x38] sm:$0xff] %vm360, %v1137
      %1148 = vst.msk [vmem:[#allocation2 + $0x40] sm:$0xff] %vm360, %v1138
      %1149 = vst.msk [vmem:[#allocation2 + $0x48] sm:$0xff] %vm360, %v1139
      %v1150 = vld [vmem:[%s251 + $0x8] sm:$0xc]
      %v1151 = vld [vmem:[%s251 + $0xc] sm:$0xf]
      %v1152 = vld [vmem:[%s251 + $0x10] sm:$0xf]
      %v1153 = vld [vmem:[%s251 + $0x14] sm:$0xf]
      %v1154 = vld [vmem:[%s251 + $0x18] sm:$0xf]
      %v1155 = vld [vmem:[%s251 + $0x1c] sm:$0xf]
      %v1156 = vld [vmem:[%s251 + $0x20] sm:$0xf]
      %v1157 = vld [vmem:[%s251 + $0x24] sm:$0xf]
      %v1158 = vld [vmem:[%s251 + $0x28] sm:$0xf]
      %v1159 = vld [vmem:[%s251 + $0x2c] sm:$0xf]
      %v1160 = vld [vmem:[%s251 + $0x30] sm:$0x3]
      %s1161 = scalar_lea.vmem %s1, 48
      %v1162 = vld [vmem:[%s1161] sm:$0xf]
      %v1163 = vld [vmem:[%s1161 + $0x4] sm:$0x3]
      %v1175 = vunpack.c.l.b16 %v1150
      %v1176 = vunpack.c.l.b16 %v1151
      %v1177 = vunpack.c.l.b16 %v1152
      %v1178 = vunpack.c.l.b16 %v1153
      %v1179 = vunpack.c.l.b16 %v1154
      %v1180 = vunpack.c.l.b16 %v1155
      %v1181 = vunpack.c.l.b16 %v1156
      %v1182 = vunpack.c.l.b16 %v1157
      %v1183 = vunpack.c.l.b16 %v1158
      %v1184 = vunpack.c.l.b16 %v1159
      %v1185 = vunpack.c.l.b16 %v1160
      %v1186 = vpack.c.b16 %v1176, %v1175
      %v1187 = vpack.c.b16 %v1178, %v1177
      %v1188 = vpack.c.b16 %v1180, %v1179
      %v1189 = vpack.c.b16 %v1182, %v1181
      %v1190 = vpack.c.b16 %v1184, %v1183
      %v1191 = vpack.c.b16 %v1185, %v1185
      %v1192 = vrot.slane %v1186, 2
      %v1193 = vrot.slane %v1187, 2
      %v1194 = vsel %vm1051, %v1192, %v1193
      %v1195 = vrot.slane %v1188, 2
      %v1196 = vsel %vm1051, %v1193, %v1195
      %v1197 = vrot.slane %v1189, 2
      %v1198 = vsel %vm1051, %v1195, %v1197
      %v1199 = vrot.slane %v1190, 2
      %v1200 = vsel %vm1051, %v1197, %v1199
      %v1201 = vrot.slane %v1191, 2
      %v1202 = vsel %vm1051, %v1199, %v1201
      %v1205 = vunpack.c.l.b16 %v1162
      %v1206 = vunpack.c.l.b16 %v1163
      %v1207 = vpack.c.b16 %v1206, %v1205
      %v1209 = vsel %vm306, %v1194, 0
      %v1212 = vsel %vm306, %v1196, 0
      %v1215 = vsel %vm306, %v1198, 0
      %v1218 = vsel %vm306, %v1200, 0
      %v1221 = vsel %vm306, %v1202, 0
      %v1224 = vsel %vm322, %v1207, 0
      %1226 = vmatpush.bf16.msra.mxu0 0
      %1227 = vmatpush.bf16.msra.mxu0 0
      %1228 = vmatpush.bf16.msra.mxu0 0
      %1229 = vmatpush.bf16.msra.mxu0 0
      %1230 = vmatpush.bf16.msra.mxu0 0
      %1231 = vmatpush.bf16.msra.mxu0 0
      %1232 = vmatpush.bf16.msra.mxu0 0
      %1233 = vmatpush.bf16.msra.mxu0 %v1224
      %1234 = vmatmul.bf16.gmra.mxu0 %v1209
      %v1235 = vpop.f32.mrf.mxu0
      %v1236 = vadd.f32 0.0, %v1235
      %v1237 = vpop.f32.mrf.mxu0
      %v1238 = vadd.f32 0.0, %v1237
      %1239 = vmatmul.bf16.gmra.mxu0 %v1212
      %v1240 = vpop.f32.mrf.mxu0
      %v1241 = vadd.f32 0.0, %v1240
      %v1242 = vpop.f32.mrf.mxu0
      %v1243 = vadd.f32 0.0, %v1242
      %1244 = vmatmul.bf16.gmra.mxu0 %v1215
      %v1245 = vpop.f32.mrf.mxu0
      %v1246 = vadd.f32 0.0, %v1245
      %v1247 = vpop.f32.mrf.mxu0
      %v1248 = vadd.f32 0.0, %v1247
      %1249 = vmatmul.bf16.gmra.mxu0 %v1218
      %v1250 = vpop.f32.mrf.mxu0
      %v1251 = vadd.f32 0.0, %v1250
      %v1252 = vpop.f32.mrf.mxu0
      %v1253 = vadd.f32 0.0, %v1252
      %1254 = vmatmul.bf16.gmra.mxu0 %v1221
      %v1255 = vpop.f32.mrf.mxu0
      %v1256 = vadd.f32 0.0, %v1255
      %v1257 = vpop.f32.mrf.mxu0
      %v1258 = vadd.f32 0.0, %v1257
      %1259 = vdwg.mxu0
      %v1260 = vld [vmem:[#allocation2] sm:$0xff]
      %v1261 = vld [vmem:[#allocation2 + $0x8] sm:$0xff]
      %v1262 = vld [vmem:[#allocation2 + $0x10] sm:$0xff]
      %v1263 = vld [vmem:[#allocation2 + $0x18] sm:$0xff]
      %v1264 = vld [vmem:[#allocation2 + $0x20] sm:$0xff]
      %v1265 = vld [vmem:[#allocation2 + $0x28] sm:$0xff]
      %v1266 = vld [vmem:[#allocation2 + $0x30] sm:$0xff]
      %v1267 = vld [vmem:[#allocation2 + $0x38] sm:$0xff]
      %v1268 = vld [vmem:[#allocation2 + $0x40] sm:$0xff]
      %v1269 = vld [vmem:[#allocation2 + $0x48] sm:$0xff]
      %v1270 = vadd.f32 %v1260, %v1236
      %v1271 = vadd.f32 %v1261, %v1238
      %v1272 = vadd.f32 %v1262, %v1241
      %v1273 = vadd.f32 %v1263, %v1243
      %v1274 = vadd.f32 %v1264, %v1246
      %v1275 = vadd.f32 %v1265, %v1248
      %v1276 = vadd.f32 %v1266, %v1251
      %v1277 = vadd.f32 %v1267, %v1253
      %v1278 = vadd.f32 %v1268, %v1256
      %v1279 = vadd.f32 %v1269, %v1258
      %1280 = vst.msk [vmem:[#allocation2] sm:$0xff] %vm360, %v1270
      %1281 = vst.msk [vmem:[#allocation2 + $0x8] sm:$0xff] %vm360, %v1271
      %1282 = vst.msk [vmem:[#allocation2 + $0x10] sm:$0xff] %vm360, %v1272
      %1283 = vst.msk [vmem:[#allocation2 + $0x18] sm:$0xff] %vm360, %v1273
      %1284 = vst.msk [vmem:[#allocation2 + $0x20] sm:$0xff] %vm360, %v1274
      %1285 = vst.msk [vmem:[#allocation2 + $0x28] sm:$0xff] %vm360, %v1275
      %1286 = vst.msk [vmem:[#allocation2 + $0x30] sm:$0xff] %vm360, %v1276
      %1287 = vst.msk [vmem:[#allocation2 + $0x38] sm:$0xff] %vm360, %v1277
      %1288 = vst.msk [vmem:[#allocation2 + $0x40] sm:$0xff] %vm360, %v1278
      %1289 = vst.msk [vmem:[#allocation2 + $0x48] sm:$0xff] %vm360, %v1279
      %v1290 = vld [vmem:[%s251 + $0x8] sm:$0xc]
      %v1291 = vld [vmem:[%s251 + $0xc] sm:$0xf]
      %v1292 = vld [vmem:[%s251 + $0x10] sm:$0xf]
      %v1293 = vld [vmem:[%s251 + $0x14] sm:$0xf]
      %v1294 = vld [vmem:[%s251 + $0x18] sm:$0xf]
      %v1295 = vld [vmem:[%s251 + $0x1c] sm:$0xf]
      %v1296 = vld [vmem:[%s251 + $0x20] sm:$0xf]
      %v1297 = vld [vmem:[%s251 + $0x24] sm:$0xf]
      %v1298 = vld [vmem:[%s251 + $0x28] sm:$0xf]
      %v1299 = vld [vmem:[%s251 + $0x2c] sm:$0xf]
      %v1300 = vld [vmem:[%s251 + $0x30] sm:$0x7]
      %s1301 = scalar_lea.vmem %s1, 56
      %v1302 = vld [vmem:[%s1301] sm:$0xf]
      %v1303 = vld [vmem:[%s1301 + $0x4] sm:$0x3]
      %v1315 = vunpack.c.l.b16 %v1290
      %v1316 = vunpack.c.l.b16 %v1291
      %v1317 = vunpack.c.l.b16 %v1292
      %v1318 = vunpack.c.l.b16 %v1293
      %v1319 = vunpack.c.l.b16 %v1294
      %v1320 = vunpack.c.l.b16 %v1295
      %v1321 = vunpack.c.l.b16 %v1296
      %v1322 = vunpack.c.l.b16 %v1297
      %v1323 = vunpack.c.l.b16 %v1298
      %v1324 = vunpack.c.l.b16 %v1299
      %v1325 = vunpack.c.l.b16 %v1300
      %v1326 = vpack.c.b16 %v1316, %v1315
      %v1327 = vpack.c.b16 %v1318, %v1317
      %v1328 = vpack.c.b16 %v1320, %v1319
      %v1329 = vpack.c.b16 %v1322, %v1321
      %v1330 = vpack.c.b16 %v1324, %v1323
      %v1331 = vpack.c.b16 %v1325, %v1325
      %vm1332 = vsmask.f32 5376
      %v1334 = vshrl.u32 %v1326, 16
      %v1336 = vrot.slane %v1334, 2
      %v1337 = vshll.u32 %v1326, 16
      %v1339 = vrot.slane %v1337, 3
      %v1340 = vor.u32 %v1336, %v1339
      %v1342 = vshrl.u32 %v1327, 16
      %v1344 = vrot.slane %v1342, 2
      %v1345 = vshll.u32 %v1327, 16
      %v1347 = vrot.slane %v1345, 3
      %v1348 = vor.u32 %v1344, %v1347
      %v1349 = vsel %vm1332, %v1340, %v1348
      %v1351 = vshrl.u32 %v1328, 16
      %v1353 = vrot.slane %v1351, 2
      %v1354 = vshll.u32 %v1328, 16
      %v1356 = vrot.slane %v1354, 3
      %v1357 = vor.u32 %v1353, %v1356
      %v1358 = vsel %vm1332, %v1348, %v1357
      %v1360 = vshrl.u32 %v1329, 16
      %v1362 = vrot.slane %v1360, 2
      %v1363 = vshll.u32 %v1329, 16
      %v1365 = vrot.slane %v1363, 3
      %v1366 = vor.u32 %v1362, %v1365
      %v1367 = vsel %vm1332, %v1357, %v1366
      %v1369 = vshrl.u32 %v1330, 16
      %v1371 = vrot.slane %v1369, 2
      %v1372 = vshll.u32 %v1330, 16
      %v1374 = vrot.slane %v1372, 3
      %v1375 = vor.u32 %v1371, %v1374
      %v1376 = vsel %vm1332, %v1366, %v1375
      %v1378 = vshrl.u32 %v1331, 16
      %v1380 = vrot.slane %v1378, 2
      %v1381 = vshll.u32 %v1331, 16
      %v1383 = vrot.slane %v1381, 3
      %v1384 = vor.u32 %v1380, %v1383
      %v1385 = vsel %vm1332, %v1375, %v1384
      %v1388 = vunpack.c.l.b16 %v1302
      %v1389 = vunpack.c.l.b16 %v1303
      %v1390 = vpack.c.b16 %v1389, %v1388
      %v1392 = vsel %vm306, %v1349, 0
      %v1395 = vsel %vm306, %v1358, 0
      %v1398 = vsel %vm306, %v1367, 0
      %v1401 = vsel %vm306, %v1376, 0
      %v1404 = vsel %vm306, %v1385, 0
      %v1407 = vsel %vm322, %v1390, 0
      %1409 = vmatpush.bf16.msra.mxu0 0
      %1410 = vmatpush.bf16.msra.mxu0 0
      %1411 = vmatpush.bf16.msra.mxu0 0
      %1412 = vmatpush.bf16.msra.mxu0 0
      %1413 = vmatpush.bf16.msra.mxu0 0
      %1414 = vmatpush.bf16.msra.mxu0 0
      %1415 = vmatpush.bf16.msra.mxu0 0
      %1416 = vmatpush.bf16.msra.mxu0 %v1407
      %1417 = vmatmul.bf16.gmra.mxu0 %v1392
      %v1418 = vpop.f32.mrf.mxu0
      %v1419 = vadd.f32 0.0, %v1418
      %v1420 = vpop.f32.mrf.mxu0
      %v1421 = vadd.f32 0.0, %v1420
      %1422 = vmatmul.bf16.gmra.mxu0 %v1395
      %v1423 = vpop.f32.mrf.mxu0
      %v1424 = vadd.f32 0.0, %v1423
      %v1425 = vpop.f32.mrf.mxu0
      %v1426 = vadd.f32 0.0, %v1425
      %1427 = vmatmul.bf16.gmra.mxu0 %v1398
      %v1428 = vpop.f32.mrf.mxu0
      %v1429 = vadd.f32 0.0, %v1428
      %v1430 = vpop.f32.mrf.mxu0
      %v1431 = vadd.f32 0.0, %v1430
      %1432 = vmatmul.bf16.gmra.mxu0 %v1401
      %v1433 = vpop.f32.mrf.mxu0
      %v1434 = vadd.f32 0.0, %v1433
      %v1435 = vpop.f32.mrf.mxu0
      %v1436 = vadd.f32 0.0, %v1435
      %1437 = vmatmul.bf16.gmra.mxu0 %v1404
      %v1438 = vpop.f32.mrf.mxu0
      %v1439 = vadd.f32 0.0, %v1438
      %v1440 = vpop.f32.mrf.mxu0
      %v1441 = vadd.f32 0.0, %v1440
      %1442 = vdwg.mxu0
      %v1443 = vld [vmem:[#allocation2] sm:$0xff]
      %v1444 = vld [vmem:[#allocation2 + $0x8] sm:$0xff]
      %v1445 = vld [vmem:[#allocation2 + $0x10] sm:$0xff]
      %v1446 = vld [vmem:[#allocation2 + $0x18] sm:$0xff]
      %v1447 = vld [vmem:[#allocation2 + $0x20] sm:$0xff]
      %v1448 = vld [vmem:[#allocation2 + $0x28] sm:$0xff]
      %v1449 = vld [vmem:[#allocation2 + $0x30] sm:$0xff]
      %v1450 = vld [vmem:[#allocation2 + $0x38] sm:$0xff]
      %v1451 = vld [vmem:[#allocation2 + $0x40] sm:$0xff]
      %v1452 = vld [vmem:[#allocation2 + $0x48] sm:$0xff]
      %v1453 = vadd.f32 %v1443, %v1419
      %v1454 = vadd.f32 %v1444, %v1421
      %v1455 = vadd.f32 %v1445, %v1424
      %v1456 = vadd.f32 %v1446, %v1426
      %v1457 = vadd.f32 %v1447, %v1429
      %v1458 = vadd.f32 %v1448, %v1431
      %v1459 = vadd.f32 %v1449, %v1434
      %v1460 = vadd.f32 %v1450, %v1436
      %v1461 = vadd.f32 %v1451, %v1439
      %v1462 = vadd.f32 %v1452, %v1441
      %1463 = vst.msk [vmem:[#allocation2] sm:$0xff] %vm360, %v1453
      %1464 = vst.msk [vmem:[#allocation2 + $0x8] sm:$0xff] %vm360, %v1454
      %1465 = vst.msk [vmem:[#allocation2 + $0x10] sm:$0xff] %vm360, %v1455
      %1466 = vst.msk [vmem:[#allocation2 + $0x18] sm:$0xff] %vm360, %v1456
      %1467 = vst.msk [vmem:[#allocation2 + $0x20] sm:$0xff] %vm360, %v1457
      %1468 = vst.msk [vmem:[#allocation2 + $0x28] sm:$0xff] %vm360, %v1458
      %1469 = vst.msk [vmem:[#allocation2 + $0x30] sm:$0xff] %vm360, %v1459
      %1470 = vst.msk [vmem:[#allocation2 + $0x38] sm:$0xff] %vm360, %v1460
      %1471 = vst.msk [vmem:[#allocation2 + $0x40] sm:$0xff] %vm360, %v1461
      %1472 = vst.msk [vmem:[#allocation2 + $0x48] sm:$0xff] %vm360, %v1462
      %v1473 = vld [vmem:[%s251 + $0x8] sm:$0x8]
      %v1474 = vld [vmem:[%s251 + $0xc] sm:$0xf]
      %v1475 = vld [vmem:[%s251 + $0x10] sm:$0xf]
      %v1476 = vld [vmem:[%s251 + $0x14] sm:$0xf]
      %v1477 = vld [vmem:[%s251 + $0x18] sm:$0xf]
      %v1478 = vld [vmem:[%s251 + $0x1c] sm:$0xf]
      %v1479 = vld [vmem:[%s251 + $0x20] sm:$0xf]
      %v1480 = vld [vmem:[%s251 + $0x24] sm:$0xf]
      %v1481 = vld [vmem:[%s251 + $0x28] sm:$0xf]
      %v1482 = vld [vmem:[%s251 + $0x2c] sm:$0xf]
      %v1483 = vld [vmem:[%s251 + $0x30] sm:$0x7]
      %s1484 = scalar_lea.vmem %s1, 64
      %v1485 = vld [vmem:[%s1484] sm:$0xf]
      %v1486 = vld [vmem:[%s1484 + $0x4] sm:$0x3]
      %v1498 = vunpack.c.l.b16 %v1473
      %v1499 = vunpack.c.l.b16 %v1474
      %v1500 = vunpack.c.l.b16 %v1475
      %v1501 = vunpack.c.l.b16 %v1476
      %v1502 = vunpack.c.l.b16 %v1477
      %v1503 = vunpack.c.l.b16 %v1478
      %v1504 = vunpack.c.l.b16 %v1479
      %v1505 = vunpack.c.l.b16 %v1480
      %v1506 = vunpack.c.l.b16 %v1481
      %v1507 = vunpack.c.l.b16 %v1482
      %v1508 = vunpack.c.l.b16 %v1483
      %v1509 = vpack.c.b16 %v1499, %v1498
      %v1510 = vpack.c.b16 %v1501, %v1500
      %v1511 = vpack.c.b16 %v1503, %v1502
      %v1512 = vpack.c.b16 %v1505, %v1504
      %v1513 = vpack.c.b16 %v1507, %v1506
      %v1514 = vpack.c.b16 %v1508, %v1508
      %vm1515 = vcmask 1044480
      %v1516 = vrot.slane %v1509, 3
      %v1517 = vrot.slane %v1510, 3
      %v1518 = vsel %vm1515, %v1516, %v1517
      %v1519 = vrot.slane %v1511, 3
      %v1520 = vsel %vm1515, %v1517, %v1519
      %v1521 = vrot.slane %v1512, 3
      %v1522 = vsel %vm1515, %v1519, %v1521
      %v1523 = vrot.slane %v1513, 3
      %v1524 = vsel %vm1515, %v1521, %v1523
      %v1525 = vrot.slane %v1514, 3
      %v1526 = vsel %vm1515, %v1523, %v1525
      %v1529 = vunpack.c.l.b16 %v1485
      %v1530 = vunpack.c.l.b16 %v1486
      %v1531 = vpack.c.b16 %v1530, %v1529
      %v1533 = vsel %vm306, %v1518, 0
      %v1536 = vsel %vm306, %v1520, 0
      %v1539 = vsel %vm306, %v1522, 0
      %v1542 = vsel %vm306, %v1524, 0
      %v1545 = vsel %vm306, %v1526, 0
      %v1548 = vsel %vm322, %v1531, 0
      %1550 = vmatpush.bf16.msra.mxu0 0
      %1551 = vmatpush.bf16.msra.mxu0 0
      %1552 = vmatpush.bf16.msra.mxu0 0
      %1553 = vmatpush.bf16.msra.mxu0 0
      %1554 = vmatpush.bf16.msra.mxu0 0
      %1555 = vmatpush.bf16.msra.mxu0 0
      %1556 = vmatpush.bf16.msra.mxu0 0
      %1557 = vmatpush.bf16.msra.mxu0 %v1548
      %1558 = vmatmul.bf16.gmra.mxu0 %v1533
      %v1559 = vpop.f32.mrf.mxu0
      %v1560 = vadd.f32 0.0, %v1559
      %v1561 = vpop.f32.mrf.mxu0
      %v1562 = vadd.f32 0.0, %v1561
      %1563 = vmatmul.bf16.gmra.mxu0 %v1536
      %v1564 = vpop.f32.mrf.mxu0
      %v1565 = vadd.f32 0.0, %v1564
      %v1566 = vpop.f32.mrf.mxu0
      %v1567 = vadd.f32 0.0, %v1566
      %1568 = vmatmul.bf16.gmra.mxu0 %v1539
      %v1569 = vpop.f32.mrf.mxu0
      %v1570 = vadd.f32 0.0, %v1569
      %v1571 = vpop.f32.mrf.mxu0
      %v1572 = vadd.f32 0.0, %v1571
      %1573 = vmatmul.bf16.gmra.mxu0 %v1542
      %v1574 = vpop.f32.mrf.mxu0
      %v1575 = vadd.f32 0.0, %v1574
      %v1576 = vpop.f32.mrf.mxu0
      %v1577 = vadd.f32 0.0, %v1576
      %1578 = vmatmul.bf16.gmra.mxu0 %v1545
      %v1579 = vpop.f32.mrf.mxu0
      %v1580 = vadd.f32 0.0, %v1579
      %v1581 = vpop.f32.mrf.mxu0
      %v1582 = vadd.f32 0.0, %v1581
      %1583 = vdwg.mxu0
      %v1584 = vld [vmem:[#allocation2] sm:$0xff]
      %v1585 = vld [vmem:[#allocation2 + $0x8] sm:$0xff]
      %v1586 = vld [vmem:[#allocation2 + $0x10] sm:$0xff]
      %v1587 = vld [vmem:[#allocation2 + $0x18] sm:$0xff]
      %v1588 = vld [vmem:[#allocation2 + $0x20] sm:$0xff]
      %v1589 = vld [vmem:[#allocation2 + $0x28] sm:$0xff]
      %v1590 = vld [vmem:[#allocation2 + $0x30] sm:$0xff]
      %v1591 = vld [vmem:[#allocation2 + $0x38] sm:$0xff]
      %v1592 = vld [vmem:[#allocation2 + $0x40] sm:$0xff]
      %v1593 = vld [vmem:[#allocation2 + $0x48] sm:$0xff]
      %v1594 = vadd.f32 %v1584, %v1560
      %v1595 = vadd.f32 %v1585, %v1562
      %v1596 = vadd.f32 %v1586, %v1565
      %v1597 = vadd.f32 %v1587, %v1567
      %v1598 = vadd.f32 %v1588, %v1570
      %v1599 = vadd.f32 %v1589, %v1572
      %v1600 = vadd.f32 %v1590, %v1575
      %v1601 = vadd.f32 %v1591, %v1577
      %v1602 = vadd.f32 %v1592, %v1580
      %v1603 = vadd.f32 %v1593, %v1582
      %1604 = vst.msk [vmem:[#allocation2] sm:$0xff] %vm360, %v1594
      %1605 = vst.msk [vmem:[#allocation2 + $0x8] sm:$0xff] %vm360, %v1595
      %1606 = vst.msk [vmem:[#allocation2 + $0x10] sm:$0xff] %vm360, %v1596
      %1607 = vst.msk [vmem:[#allocation2 + $0x18] sm:$0xff] %vm360, %v1597
      %1608 = vst.msk [vmem:[#allocation2 + $0x20] sm:$0xff] %vm360, %v1598
      %1609 = vst.msk [vmem:[#allocation2 + $0x28] sm:$0xff] %vm360, %v1599
      %1610 = vst.msk [vmem:[#allocation2 + $0x30] sm:$0xff] %vm360, %v1600
      %1611 = vst.msk [vmem:[#allocation2 + $0x38] sm:$0xff] %vm360, %v1601
      %1612 = vst.msk [vmem:[#allocation2 + $0x40] sm:$0xff] %vm360, %v1602
      %1613 = vst.msk [vmem:[#allocation2 + $0x48] sm:$0xff] %vm360, %v1603
      %v1614 = vld [vmem:[#allocation2] sm:$0xff]
      %v1615 = vld [vmem:[#allocation2 + $0x8] sm:$0xff]
      %v1616 = vld [vmem:[#allocation2 + $0x10] sm:$0xff]
      %v1617 = vld [vmem:[#allocation2 + $0x18] sm:$0xff]
      %v1618 = vld [vmem:[#allocation2 + $0x20] sm:$0xff]
      %v1619 = vld [vmem:[#allocation2 + $0x28] sm:$0xff]
      %v1620 = vld [vmem:[#allocation2 + $0x30] sm:$0xff]
      %v1621 = vld [vmem:[#allocation2 + $0x38] sm:$0xff]
      %v1622 = vld [vmem:[#allocation2 + $0x40] sm:$0xff]
      %v1623 = vld [vmem:[#allocation2 + $0x48] sm:$0xff]
      %v1625 = vperm.slane %v263, 0
      %v1627 = vadd.f32 %v1614, %v1625
      %v1628 = vadd.f32 %v1615, %v1625
      %v1629 = vadd.f32 %v1616, %v1625
      %v1630 = vadd.f32 %v1617, %v1625
      %v1631 = vadd.f32 %v1618, %v1625
      %v1632 = vadd.f32 %v1619, %v1625
      %v1633 = vadd.f32 %v1620, %v1625
      %v1634 = vadd.f32 %v1621, %v1625
      %v1635 = vadd.f32 %v1622, %v1625
      %v1636 = vadd.f32 %v1623, %v1625
      %v1637 = vmul.f32 %v1627, %v1627
      %v1638 = vmul.f32 %v1628, %v1628
      %v1639 = vmul.f32 %v1629, %v1629
      %v1640 = vmul.f32 %v1630, %v1630
      %v1641 = vmul.f32 %v1631, %v1631
      %v1642 = vmul.f32 %v1632, %v1632
      %v1643 = vmul.f32 %v1633, %v1633
      %v1644 = vmul.f32 %v1634, %v1634
      %v1645 = vmul.f32 %v1635, %v1635
      %v1646 = vmul.f32 %v1636, %v1636
      %v1647 = vld [vmem:[%s3] sm:$0xff]
      %v1648 = vld [vmem:[%s3 + $0x8] sm:$0xff]
      %v1649 = vld [vmem:[%s3 + $0x10] sm:$0xff]
      %v1650 = vld [vmem:[%s3 + $0x18] sm:$0xff]
      %v1651 = vld [vmem:[%s4] sm:$0x1]
      %v1653 = vperm.slane %v1651, 0
      %v1656 = vsel %vm360, %v1637, 0
      %v1659 = vsel %vm360, %v1638, 0
      %v1662 = vsel %vm360, %v1639, 0
      %v1665 = vsel %vm360, %v1640, 0
      %v1668 = vsel %vm360, %v1641, 0
      %v1671 = vsel %vm360, %v1642, 0
      %v1674 = vsel %vm360, %v1643, 0
      %v1677 = vsel %vm360, %v1644, 0
      %v1680 = vsel %vm360, %v1645, 0
      %v1683 = vsel %vm360, %v1646, 0
      %1685 = vmatpush.msra.mxu0 0.0
      %1686 = vmatpush.msra.mxu0 0.0
      %1687 = vmatpush.msra.mxu0 0.0
      %1688 = vmatpush.msra.mxu0 0.0
      %1689 = vmatpush.msra.mxu0 0.0
      %1690 = vmatpush.msra.mxu0 0.0
      %1691 = vmatpush.msra.mxu0 0.0
      %1692 = vmatpush.msra.mxu0 0.0
      %1693 = vmatpush.msra.mxu0 0.0
      %1694 = vmatpush.msra.mxu0 0.0
      %1695 = vmatpush.msra.mxu0 0.0
      %1696 = vmatpush.msra.mxu0 0.0
      %1697 = vmatpush.msra.mxu0 %v1650
      %1698 = vmatpush.msra.mxu0 %v1649
      %1699 = vmatpush.msra.mxu0 %v1648
      %1700 = vmatpush.msra.mxu0 %v1647
      %1701 = vmatmul.f32.gmra.mxu0 %v1656
      %v1702 = vpop.f32.mrf.mxu0
      %v1703 = vadd.f32 %v1653, %v1702
      %1704 = vmatmul.f32.gmra.mxu0 %v1659
      %v1705 = vpop.f32.mrf.mxu0
      %v1706 = vadd.f32 %v1653, %v1705
      %1707 = vmatmul.f32.gmra.mxu0 %v1662
      %v1708 = vpop.f32.mrf.mxu0
      %v1709 = vadd.f32 %v1653, %v1708
      %1710 = vmatmul.f32.gmra.mxu0 %v1665
      %v1711 = vpop.f32.mrf.mxu0
      %v1712 = vadd.f32 %v1653, %v1711
      %1713 = vmatmul.f32.gmra.mxu0 %v1668
      %v1714 = vpop.f32.mrf.mxu0
      %v1715 = vadd.f32 %v1653, %v1714
      %1716 = vmatmul.f32.gmra.mxu0 %v1671
      %v1717 = vpop.f32.mrf.mxu0
      %v1718 = vadd.f32 %v1653, %v1717
      %1719 = vmatmul.f32.gmra.mxu0 %v1674
      %v1720 = vpop.f32.mrf.mxu0
      %v1721 = vadd.f32 %v1653, %v1720
      %1722 = vmatmul.f32.gmra.mxu0 %v1677
      %v1723 = vpop.f32.mrf.mxu0
      %v1724 = vadd.f32 %v1653, %v1723
      %1725 = vmatmul.f32.gmra.mxu0 %v1680
      %v1726 = vpop.f32.mrf.mxu0
      %v1727 = vadd.f32 %v1653, %v1726
      %1728 = vmatmul.f32.gmra.mxu0 %v1683
      %v1729 = vpop.f32.mrf.mxu0
      %v1730 = vadd.f32 %v1653, %v1729
      %1731 = vdwg.mxu0
      %v1732 = vrsqrt.pop %v1703
      %v1733 = vmul.f32 %v1732, %v1703
      %v1734 = vmul.f32 %v1733, %v1732
      %v1735 = vmul.f32 0.5, %v1734
      %v1736 = vsub.f32 1.5, %v1735
      %v1737 = vmul.f32 %v1732, %v1736
      %vm1738 = vweird.f32 %v1703
      %vm1739 = vweird.f32 %v1732
      %vm1740 = vmor %vm1738, %vm1739
      %v1741 = vsel %vm1740, %v1732, %v1737
      %v1742 = vrsqrt.pop %v1706
      %v1743 = vmul.f32 %v1742, %v1706
      %v1744 = vmul.f32 %v1743, %v1742
      %v1745 = vmul.f32 0.5, %v1744
      %v1746 = vsub.f32 1.5, %v1745
      %v1747 = vmul.f32 %v1742, %v1746
      %vm1748 = vweird.f32 %v1706
      %vm1749 = vweird.f32 %v1742
      %vm1750 = vmor %vm1748, %vm1749
      %v1751 = vsel %vm1750, %v1742, %v1747
      %v1752 = vrsqrt.pop %v1709
      %v1753 = vmul.f32 %v1752, %v1709
      %v1754 = vmul.f32 %v1753, %v1752
      %v1755 = vmul.f32 0.5, %v1754
      %v1756 = vsub.f32 1.5, %v1755
      %v1757 = vmul.f32 %v1752, %v1756
      %vm1758 = vweird.f32 %v1709
      %vm1759 = vweird.f32 %v1752
      %vm1760 = vmor %vm1758, %vm1759
      %v1761 = vsel %vm1760, %v1752, %v1757
      %v1762 = vrsqrt.pop %v1712
      %v1763 = vmul.f32 %v1762, %v1712
      %v1764 = vmul.f32 %v1763, %v1762
      %v1765 = vmul.f32 0.5, %v1764
      %v1766 = vsub.f32 1.5, %v1765
      %v1767 = vmul.f32 %v1762, %v1766
      %vm1768 = vweird.f32 %v1712
      %vm1769 = vweird.f32 %v1762
      %vm1770 = vmor %vm1768, %vm1769
      %v1771 = vsel %vm1770, %v1762, %v1767
      %v1772 = vrsqrt.pop %v1715
      %v1773 = vmul.f32 %v1772, %v1715
      %v1774 = vmul.f32 %v1773, %v1772
      %v1775 = vmul.f32 0.5, %v1774
      %v1776 = vsub.f32 1.5, %v1775
      %v1777 = vmul.f32 %v1772, %v1776
      %vm1778 = vweird.f32 %v1715
      %vm1779 = vweird.f32 %v1772
      %vm1780 = vmor %vm1778, %vm1779
      %v1781 = vsel %vm1780, %v1772, %v1777
      %v1782 = vrsqrt.pop %v1718
      %v1783 = vmul.f32 %v1782, %v1718
      %v1784 = vmul.f32 %v1783, %v1782
      %v1785 = vmul.f32 0.5, %v1784
      %v1786 = vsub.f32 1.5, %v1785
      %v1787 = vmul.f32 %v1782, %v1786
      %vm1788 = vweird.f32 %v1718
      %vm1789 = vweird.f32 %v1782
      %vm1790 = vmor %vm1788, %vm1789
      %v1791 = vsel %vm1790, %v1782, %v1787
      %v1792 = vrsqrt.pop %v1721
      %v1793 = vmul.f32 %v1792, %v1721
      %v1794 = vmul.f32 %v1793, %v1792
      %v1795 = vmul.f32 0.5, %v1794
      %v1796 = vsub.f32 1.5, %v1795
      %v1797 = vmul.f32 %v1792, %v1796
      %vm1798 = vweird.f32 %v1721
      %vm1799 = vweird.f32 %v1792
      %vm1800 = vmor %vm1798, %vm1799
      %v1801 = vsel %vm1800, %v1792, %v1797
      %v1802 = vrsqrt.pop %v1724
      %v1803 = vmul.f32 %v1802, %v1724
      %v1804 = vmul.f32 %v1803, %v1802
      %v1805 = vmul.f32 0.5, %v1804
      %v1806 = vsub.f32 1.5, %v1805
      %v1807 = vmul.f32 %v1802, %v1806
      %vm1808 = vweird.f32 %v1724
      %vm1809 = vweird.f32 %v1802
      %vm1810 = vmor %vm1808, %vm1809
      %v1811 = vsel %vm1810, %v1802, %v1807
      %v1812 = vrsqrt.pop %v1727
      %v1813 = vmul.f32 %v1812, %v1727
      %v1814 = vmul.f32 %v1813, %v1812
      %v1815 = vmul.f32 0.5, %v1814
      %v1816 = vsub.f32 1.5, %v1815
      %v1817 = vmul.f32 %v1812, %v1816
      %vm1818 = vweird.f32 %v1727
      %vm1819 = vweird.f32 %v1812
      %vm1820 = vmor %vm1818, %vm1819
      %v1821 = vsel %vm1820, %v1812, %v1817
      %v1822 = vrsqrt.pop %v1730
      %v1823 = vmul.f32 %v1822, %v1730
      %v1824 = vmul.f32 %v1823, %v1822
      %v1825 = vmul.f32 0.5, %v1824
      %v1826 = vsub.f32 1.5, %v1825
      %v1827 = vmul.f32 %v1822, %v1826
      %vm1828 = vweird.f32 %v1730
      %vm1829 = vweird.f32 %v1822
      %vm1830 = vmor %vm1828, %vm1829
      %v1831 = vsel %vm1830, %v1822, %v1827
      %v1832 = vmul.f32 %v1627, %v1741
      %v1833 = vmul.f32 %v1628, %v1751
      %v1834 = vmul.f32 %v1629, %v1761
      %v1835 = vmul.f32 %v1630, %v1771
      %v1836 = vmul.f32 %v1631, %v1781
      %v1837 = vmul.f32 %v1632, %v1791
      %v1838 = vmul.f32 %v1633, %v1801
      %v1839 = vmul.f32 %v1634, %v1811
      %v1840 = vmul.f32 %v1635, %v1821
      %v1841 = vmul.f32 %v1636, %v1831
      %1842 = vst.msk [vmem:[%s260] sm:$0xff] %vm360, %v1832
      %1843 = vst.msk [vmem:[%s260 + $0x8] sm:$0xff] %vm360, %v1833
      %1844 = vst.msk [vmem:[%s260 + $0x10] sm:$0xff] %vm360, %v1834
      %1845 = vst.msk [vmem:[%s260 + $0x18] sm:$0xff] %vm360, %v1835
      %1846 = vst.msk [vmem:[%s260 + $0x20] sm:$0xff] %vm360, %v1836
      %1847 = vst.msk [vmem:[%s260 + $0x28] sm:$0xff] %vm360, %v1837
      %1848 = vst.msk [vmem:[%s260 + $0x30] sm:$0xff] %vm360, %v1838
      %1849 = vst.msk [vmem:[%s260 + $0x38] sm:$0xff] %vm360, %v1839
      %1850 = vst.msk [vmem:[%s260 + $0x40] sm:$0xff] %vm360, %v1840
      %1851 = vst.msk [vmem:[%s260 + $0x48] sm:$0xff] %vm360, %v1841
      %s1852 = smul.u32 10, %s21
      %p1853 = scmp.lt.s32.totalorder %s20, 1
      %s1854 = scalar_select %p1853, %s20, 1
      %p1855 = scmp.lt.s32.totalorder %s1852, 9
      %s1856 = scalar_select %p1855, %s1852, 9
      %s1857 = smul.addr %s1854, 10
      %s1858 = sadd.s32 %s1856, %s1857
      %s1859 = smul.addr %s1858, 8
      %s1860 = scalar_lea.vmem %s5, %s1859
      // Predicated region
      $region41: #{tpu_custom_call.1} parent=39 // pred_check
        %p1861 = pneg %p160
      $region42: #{tpu_custom_call.1} parent=39 // pred_check_branch
        %1863 = sbr.rel (%p1861) target = $region44
      $region43: #{tpu_custom_call.1} parent=39 // pred_region
        %s1864 = smul.u32 10, %s21
      $region44: #{tpu_custom_call.1} parent=39 // pred_fallthru
        _
    $region40: #{tpu_custom_call.1} parent=5 // pred_fallthru
      _
    %p1865 = scmp.le.s32.totalorder 2, %s11
    // Predicated region
    $region45: #{tpu_custom_call.1} parent=5 // pred_check
      %p1866 = pneg %p1865
    $region46: #{tpu_custom_call.1} parent=5 // pred_check_branch
      %1868 = sbr.rel (%p1866) target = $region48
    $region47: #{tpu_custom_call.1} parent=5 // pred_region
      %s1869 = ssub.s32 %s11, 2
      // Predicated region
      $region49: #{tpu_custom_call.1} parent=47 // pred_check
        %p1870 = pneg %p166
      $region50: #{tpu_custom_call.1} parent=47 // pred_check_branch
        %1872 = sbr.rel (%p1870) target = $region52
      $region51: #{tpu_custom_call.1} parent=47 // pred_region
        %s1873 = smul.u32 10, %s23
        %p1874 = scmp.lt.s32.totalorder %s22, 1
        %s1875 = scalar_select %p1874, %s22, 1
        %p1876 = scmp.lt.s32.totalorder %s1873, 9
        %s1877 = scalar_select %p1876, %s1873, 9
        %s1878 = smul.addr %s1875, 10
        %s1879 = sadd.s32 %s1877, %s1878
        %s1880 = smul.addr %s1879, 8
        %s1881 = scalar_lea.vmem %s5, %s1880
      $region52: #{tpu_custom_call.1} parent=47 // pred_fallthru
        _
    $region48: #{tpu_custom_call.1} parent=5 // pred_fallthru
      _
  $region6: #{tpu_custom_call.1} parent=0 // loop_footer
    %s15 = sadd.s32 1, %s11
  $region7: #{tpu_custom_call.1} parent=0 // loop_footer_branch
    %10 = sbr.rel target = $region3
  $region8: #{tpu_custom_call.1} parent=0 // loop_exit
    _

</llo_original>
